<compile_context>
chip_gen: v7x
topology: tpu7x:2x2x1
jax: 0.10.0
libtpu: 0.0.40
codegen_flags: <defaults>
</compile_context>

<pallas_src>
import functools

import jax
import jax.numpy as jnp
from jax.experimental import pallas as pl
from jax.experimental.pallas import tpu as pltpu

BN_EPS = 1e-5
LANES = 128      # all channel dims (4, 16, 32, 64, 10) padded to one MXU tile
MAX_TB = 1024    # batch-tile cap (rows)


def _round_up(n, m):
    return (n + m - 1) // m * m


# ----------------------------------------------------------------------------
# Single fused kernel: the entire ResNet forward on one (TB, 128) batch tile.
#   x_ref : (TB, data_dim)   raw input tile (not lane-padded in HBM)
#   w_ref : (L, 128, 128)    BN-folded, zero-padded weights, bf16, VMEM-resident
#   b_ref : (L, 1, 128)      per-channel biases (BN shift / linear bias), f32
#   x_buf : (TB, 128)        VMEM scratch used to lane-pad the input tile
#   block_cfg : static tuple of (l_conv1, l_conv2, l_shortcut_or_None)
#   l_final   : static index of the final linear layer
# ----------------------------------------------------------------------------
def _resnet_fused_kernel(x_ref, w_ref, b_ref, o_ref, x_buf,
                         *, block_cfg, l_final, data_dim):
    # Lane-pad the (TB, data_dim) tile to (TB, 128) once, in VMEM.
    x_buf[...] = jnp.zeros_like(x_buf)
    x_buf[:, :data_dim] = x_ref[...]

    def layer(act, l, relu):
        # bf16 operands on the MXU, f32 accumulation; everything else f32.
        y = jnp.dot(act.astype(jnp.bfloat16), w_ref[l],
                    preferred_element_type=jnp.float32) + b_ref[l]
        return jnp.maximum(y, 0.0) if relu else y

    # conv1 + bn1 + relu
    act = layer(x_buf[...], 0, relu=True)

    # residual blocks (statically unrolled -- 6 blocks, 11 matmuls)
    for l1, l2, ls in block_cfg:
        res = act if ls is None else layer(act, ls, relu=False)
        h = layer(act, l1, relu=True)
        act = jnp.maximum(layer(h, l2, relu=False) + res, 0.0)

    # AdaptiveAvgPool1d(1) on a length-1 sequence is the identity; final linear.
    o_ref[...] = layer(act, l_final, relu=False).astype(o_ref.dtype)


def _choose_tiling(B):
    """Pick (TB, B_pad): TB multiple of 8, <= MAX_TB, and >=2 grid tiles
    whenever the padded batch allows it (so v7x can shard across both TCs)."""
    B8 = _round_up(max(B, 1), 8)
    if B8 >= 16:
        TB = min(MAX_TB, _round_up(pl.cdiv(B8, 2), 8))
    else:
        TB = B8
    B_pad = _round_up(B8, TB)
    return TB, B_pad


def resnet_forward(x, packed, num_classes=10):
    """x: (B, data_dim) float32 -> (B, num_classes) float32."""
    w_slab, b_slab, block_cfg, l_final = packed
    L = w_slab.shape[0]
    B, data_dim = x.shape
    TB, B_pad = _choose_tiling(B)

    x = x.astype(jnp.float32)
    if B_pad != B:
        # Row-pad only (tiny: B_pad x data_dim), no 128-lane HBM padding.
        x_in = jnp.zeros((B_pad, data_dim), jnp.float32).at[:B].set(x)
    else:
        x_in = x

    out = pl.pallas_call(
        functools.partial(_resnet_fused_kernel, block_cfg=block_cfg,
                          l_final=l_final, data_dim=data_dim),
        out_shape=jax.ShapeDtypeStruct((B_pad, LANES), jnp.float32),
        grid_spec=pltpu.PrefetchScalarGridSpec(
            num_scalar_prefetch=0,
            grid=(B_pad // TB,),
            in_specs=[
                pl.BlockSpec((TB, data_dim), lambda i: (i, 0)),           # input tile
                pl.BlockSpec((L, LANES, LANES), lambda i: (0, 0, 0)),     # weights (resident)
                pl.BlockSpec((L, 1, LANES), lambda i: (0, 0, 0)),         # biases (resident)
            ],
            out_specs=pl.BlockSpec((TB, LANES), lambda i: (i, 0)),
            scratch_shapes=[pltpu.VMEM((TB, LANES), jnp.float32)],
        ),
        compiler_params=pltpu.CompilerParams(
            dimension_semantics=("parallel",),      # shard batch tiles on v7x's 2 TCs
            vmem_limit_bytes=32 * 1024 * 1024,      # safe on v7x (64 MiB physical)
        ),
    )(x_in, w_slab, b_slab)
    return out[:B, :num_classes]


# ----------------------------------------------------------------------------
# Deterministic parameter construction (synthetic weights, no checkpoint).
# ----------------------------------------------------------------------------
def _bn_fold(key, c):
    k1, k2, k3, k4 = jax.random.split(key, 4)
    gamma = jax.random.uniform(k1, (c,), jnp.float32, 0.5, 1.5)
    beta = 0.1 * jax.random.normal(k2, (c,), jnp.float32)
    running_mean = 0.1 * jax.random.normal(k3, (c,), jnp.float32)
    running_var = jax.random.uniform(k4, (c,), jnp.float32, 0.5, 1.5)
    scale = gamma / jnp.sqrt(running_var + BN_EPS)
    shift = beta - running_mean * scale
    return scale, shift


def _conv_center_tap(key, c_in, c_out):
    # Centre tap of a (c_out, c_in, 3) Conv1d weight, stored as (c_in, c_out).
    return 0.1 * jax.random.normal(key, (c_in, c_out), jnp.float32)


def make_basic_block_params(key, in_planes, planes, stride):
    ks = jax.random.split(key, 6)
    p = {
        "w1": _conv_center_tap(ks[0], in_planes, planes),
        "bn1": _bn_fold(ks[1], planes),
        "w2": _conv_center_tap(ks[2], planes, planes),
        "bn2": _bn_fold(ks[3], planes),
        "has_shortcut": (stride != 1 or in_planes != planes),  # expansion = 1
    }
    if p["has_shortcut"]:
        p["ws"] = 0.1 * jax.random.normal(ks[4], (in_planes, planes), jnp.float32)
        p["bns"] = _bn_fold(ks[5], planes)
    return p


def make_resnet_params(key, num_blocks=(2, 2, 2), num_classes=10, data_dim=4):
    keys = jax.random.split(key, 16)
    params = {
        "conv1": _conv_center_tap(keys[0], data_dim, 16),
        "bn1": _bn_fold(keys[1], 16),
    }
    in_planes = 16
    kidx = 2
    for li, (planes, nblk, stride) in enumerate(
        zip((16, 32, 64), num_blocks, (1, 2, 2)), start=1
    ):
        strides = [stride] + [1] * (nblk - 1)
        blocks = []
        for s in strides:
            blocks.append(make_basic_block_params(keys[kidx], in_planes, planes, s))
            kidx += 1
            in_planes = planes
        params[f"layer{li}"] = blocks
    params["linear_w"] = 0.1 * jax.random.normal(keys[kidx], (64, num_classes), jnp.float32)
    params["linear_b"] = 0.1 * jax.random.normal(keys[kidx + 1], (num_classes,), jnp.float32)
    return params


# ----------------------------------------------------------------------------
# Packing: fold BN into weights, zero-pad everything to 128 lanes, stack into
# one (L, 128, 128) bf16 weight slab + (L, 1, 128) f32 bias slab + static cfg.
# ----------------------------------------------------------------------------
def pack_params(params):
    ws, bs = [], []

    def add(w, scale, shift):
        c_in, c_out = w.shape
        w_folded = w * scale[None, :]
        wp = jnp.zeros((LANES, LANES), jnp.float32).at[:c_in, :c_out].set(w_folded)
        bp = jnp.zeros((1, LANES), jnp.float32).at[0, :c_out].set(shift)
        ws.append(wp)
        bs.append(bp)
        return len(ws) - 1

    add(params["conv1"], *params["bn1"])  # layer index 0
    block_cfg = []
    for li in (1, 2, 3):
        for p in params[f"layer{li}"]:
            l1 = add(p["w1"], *p["bn1"])
            l2 = add(p["w2"], *p["bn2"])
            ls = add(p["ws"], *p["bns"]) if p["has_shortcut"] else None
            block_cfg.append((l1, l2, ls))

    n_classes = params["linear_w"].shape[1]
    l_final = add(
        params["linear_w"], jnp.ones((n_classes,), jnp.float32), params["linear_b"]
    )

    w_slab = jnp.stack(ws).astype(jnp.bfloat16)   # (L, 128, 128) bf16 (MXU-native)
    b_slab = jnp.stack(bs)                        # (L, 1, 128) f32
    return w_slab, b_slab, tuple(block_cfg), l_final


# ----------------------------------------------------------------------------
# Pure-JAX f32 reference (unfolded BN, unpadded) for a correctness check.
# ----------------------------------------------------------------------------
def _ref_layer(x, w, scale, shift, res=None, relu=False):
    y = x @ w
    y = y * scale[None, :] + shift[None, :]
    if res is not None:
        y = y + res
    return jnp.maximum(y, 0.0) if relu else y


def resnet_reference(x, params):
    out = _ref_layer(x, params["conv1"], *params["bn1"], relu=True)
    for li in (1, 2, 3):
        for p in params[f"layer{li}"]:
            sc = _ref_layer(out, p["ws"], *p["bns"]) if p["has_shortcut"] else out
            h = _ref_layer(out, p["w1"], *p["bn1"], relu=True)
            out = _ref_layer(h, p["w2"], *p["bn2"], res=sc, relu=True)
    return out @ params["linear_w"] + params["linear_b"][None, :]


if __name__ == "__main__":
    DATA_DIM, NUM_CLASSES = 4, 10
    key = jax.random.PRNGKey(0)
    kx, kp, kx2 = jax.random.split(key, 3)

    params = make_resnet_params(
        kp, num_blocks=(2, 2, 2), num_classes=NUM_CLASSES, data_dim=DATA_DIM
    )
    packed = pack_params(params)
    fwd = jax.jit(lambda x: resnet_forward(x, packed, NUM_CLASSES))

    # Small batch: single tile, single grid step.
    x = jax.random.normal(kx, (8, DATA_DIM), jnp.float32)
    out = jax.block_until_ready(fwd(x))
    assert out.shape == (8, NUM_CLASSES), out.shape
    ref = resnet_reference(x, params)
    # bf16 MXU operands -> relaxed tolerance vs the f32 reference.
    assert jnp.allclose(out, ref, atol=3e-2, rtol=3e-2), float(jnp.max(jnp.abs(out - ref)))

    # Ragged larger batch: >=2 grid tiles (both v7x TCs) + padded batch rows.
    x2 = jax.random.normal(kx2, (200, DATA_DIM), jnp.float32)
    out2 = jax.block_until_ready(fwd(x2))
    assert out2.shape == (200, NUM_CLASSES), out2.shape
    ref2 = resnet_reference(x2, params)
    assert jnp.allclose(out2, ref2, atol=3e-2, rtol=3e-2), float(jnp.max(jnp.abs(out2 - ref2)))

    print("KERNEL_OK")
</pallas_src>

<mosaic_0001>
module attributes {stable_mosaic.version = 11 : i64} {
  func.func @_resnet_fused_kernel(%arg0: i32, %arg1: memref<8x4xf32, #tpu.memory_space<vmem>>, %arg2: memref<16x128x128xbf16, #tpu.memory_space<vmem>>, %arg3: memref<16x1x128xf32, #tpu.memory_space<vmem>>, %arg4: memref<8x128xf32, #tpu.memory_space<vmem>>, %arg5: memref<8x128xf32, #tpu.memory_space<vmem>>) attributes {dimension_semantics = [#tpu.dimension_semantics<parallel>], iteration_bounds = array<i64: 1>, scalar_prefetch = 0 : i64, scratch_operands = 1 : i64, tpu.core_type = #tpu.core_type<tc>, window_params = [{transform_indices = @transform_0, window_bounds = array<i64: 8, 4>}, {pipeline_mode = #tpu.pipeline_mode<synchronous>, transform_indices = @transform_1, window_bounds = array<i64: 16, 128, 128>}, {pipeline_mode = #tpu.pipeline_mode<synchronous>, transform_indices = @transform_2, window_bounds = array<i64: 16, 1, 128>}, {transform_indices = @transform_3, window_bounds = array<i64: 8, 128>}]} {
    %cst = arith.constant 0.000000e+00 : f32
    %0 = vector.broadcast %cst : f32 to vector<8x128xf32>
    %c0 = arith.constant 0 : index
    %c0_0 = arith.constant 0 : index
    %1 = vector.load %arg5[%c0, %c0_0] : memref<8x128xf32, #tpu.memory_space<vmem>>, vector<8x128xf32>
    tpu.vector_store %arg5[%c0, %c0_0], %0 {strides = array<i32>} : memref<8x128xf32, #tpu.memory_space<vmem>>, vector<8x128xf32>,
    %c0_1 = arith.constant 0 : index
    %c0_2 = arith.constant 0 : index
    %2 = vector.load %arg1[%c0_1, %c0_2] : memref<8x4xf32, #tpu.memory_space<vmem>>, vector<8x4xf32>
    %c0_3 = arith.constant 0 : index
    %c0_4 = arith.constant 0 : index
    %3 = vector.load %arg5[%c0_3, %c0_4] : memref<8x128xf32, #tpu.memory_space<vmem>>, vector<8x4xf32>
    tpu.vector_store %arg5[%c0_3, %c0_4], %2 {strides = array<i32>} : memref<8x128xf32, #tpu.memory_space<vmem>>, vector<8x4xf32>,
    %c0_5 = arith.constant 0 : index
    %c0_6 = arith.constant 0 : index
    %4 = vector.load %arg5[%c0_5, %c0_6] : memref<8x128xf32, #tpu.memory_space<vmem>>, vector<8x128xf32>
    %5 = arith.truncf %4 : vector<8x128xf32> to vector<8x128xbf16>
    %c0_7 = arith.constant 0 : index
    %c0_8 = arith.constant 0 : index
    %c0_9 = arith.constant 0 : index
    %6 = vector.load %arg2[%c0_7, %c0_8, %c0_9] : memref<16x128x128xbf16, #tpu.memory_space<vmem>>, vector<1x128x128xbf16>
    %7 = vector.shape_cast %6 : vector<1x128x128xbf16> to vector<128x128xbf16>
    %cst_10 = arith.constant dense<0.000000e+00> : vector<8x128xf32>
    %8 = tpu.matmul %5, %7, %cst_10 {dimension_numbers = #tpu.dot_dimension_numbers<[1], [0], [0], [1], [0, 0, 1, 1], [], []>} : vector<8x128xbf16>, vector<128x128xbf16>, vector<8x128xf32> -> vector<8x128xf32>
    %c0_11 = arith.constant 0 : index
    %c0_12 = arith.constant 0 : index
    %c0_13 = arith.constant 0 : index
    %9 = vector.load %arg3[%c0_11, %c0_12, %c0_13] : memref<16x1x128xf32, #tpu.memory_space<vmem>>, vector<1x1x128xf32>
    %10 = vector.shape_cast %9 : vector<1x1x128xf32> to vector<1x128xf32>
    %11 = vector.broadcast %10 : vector<1x128xf32> to vector<8x128xf32>
    %12 = arith.addf %8, %11 : vector<8x128xf32>
    %cst_14 = arith.constant 0.000000e+00 : f32
    %13 = vector.broadcast %cst_14 : f32 to vector<8x128xf32>
    %14 = arith.maximumf %12, %13 : vector<8x128xf32>
    %15 = arith.truncf %14 : vector<8x128xf32> to vector<8x128xbf16>
    %c1 = arith.constant 1 : index
    %c0_15 = arith.constant 0 : index
    %c0_16 = arith.constant 0 : index
    %16 = vector.load %arg2[%c1, %c0_15, %c0_16] : memref<16x128x128xbf16, #tpu.memory_space<vmem>>, vector<1x128x128xbf16>
    %17 = vector.shape_cast %16 : vector<1x128x128xbf16> to vector<128x128xbf16>
    %cst_17 = arith.constant dense<0.000000e+00> : vector<8x128xf32>
    %18 = tpu.matmul %15, %17, %cst_17 {dimension_numbers = #tpu.dot_dimension_numbers<[1], [0], [0], [1], [0, 0, 1, 1], [], []>} : vector<8x128xbf16>, vector<128x128xbf16>, vector<8x128xf32> -> vector<8x128xf32>
    %c1_18 = arith.constant 1 : index
    %c0_19 = arith.constant 0 : index
    %c0_20 = arith.constant 0 : index
    %19 = vector.load %arg3[%c1_18, %c0_19, %c0_20] : memref<16x1x128xf32, #tpu.memory_space<vmem>>, vector<1x1x128xf32>
    %20 = vector.shape_cast %19 : vector<1x1x128xf32> to vector<1x128xf32>
    %21 = vector.broadcast %20 : vector<1x128xf32> to vector<8x128xf32>
    %22 = arith.addf %18, %21 : vector<8x128xf32>
    %cst_21 = arith.constant 0.000000e+00 : f32
    %23 = vector.broadcast %cst_21 : f32 to vector<8x128xf32>
    %24 = arith.maximumf %22, %23 : vector<8x128xf32>
    %25 = arith.truncf %24 : vector<8x128xf32> to vector<8x128xbf16>
    %c2 = arith.constant 2 : index
    %c0_22 = arith.constant 0 : index
    %c0_23 = arith.constant 0 : index
    %26 = vector.load %arg2[%c2, %c0_22, %c0_23] : memref<16x128x128xbf16, #tpu.memory_space<vmem>>, vector<1x128x128xbf16>
    %27 = vector.shape_cast %26 : vector<1x128x128xbf16> to vector<128x128xbf16>
    %cst_24 = arith.constant dense<0.000000e+00> : vector<8x128xf32>
    %28 = tpu.matmul %25, %27, %cst_24 {dimension_numbers = #tpu.dot_dimension_numbers<[1], [0], [0], [1], [0, 0, 1, 1], [], []>} : vector<8x128xbf16>, vector<128x128xbf16>, vector<8x128xf32> -> vector<8x128xf32>
    %c2_25 = arith.constant 2 : index
    %c0_26 = arith.constant 0 : index
    %c0_27 = arith.constant 0 : index
    %29 = vector.load %arg3[%c2_25, %c0_26, %c0_27] : memref<16x1x128xf32, #tpu.memory_space<vmem>>, vector<1x1x128xf32>
    %30 = vector.shape_cast %29 : vector<1x1x128xf32> to vector<1x128xf32>
    %31 = vector.broadcast %30 : vector<1x128xf32> to vector<8x128xf32>
    %32 = arith.addf %28, %31 : vector<8x128xf32>
    %33 = arith.addf %32, %14 : vector<8x128xf32>
    %cst_28 = arith.constant 0.000000e+00 : f32
    %34 = vector.broadcast %cst_28 : f32 to vector<8x128xf32>
    %35 = arith.maximumf %33, %34 : vector<8x128xf32>
    %36 = arith.truncf %35 : vector<8x128xf32> to vector<8x128xbf16>
    %c3 = arith.constant 3 : index
    %c0_29 = arith.constant 0 : index
    %c0_30 = arith.constant 0 : index
    %37 = vector.load %arg2[%c3, %c0_29, %c0_30] : memref<16x128x128xbf16, #tpu.memory_space<vmem>>, vector<1x128x128xbf16>
    %38 = vector.shape_cast %37 : vector<1x128x128xbf16> to vector<128x128xbf16>
    %cst_31 = arith.constant dense<0.000000e+00> : vector<8x128xf32>
    %39 = tpu.matmul %36, %38, %cst_31 {dimension_numbers = #tpu.dot_dimension_numbers<[1], [0], [0], [1], [0, 0, 1, 1], [], []>} : vector<8x128xbf16>, vector<128x128xbf16>, vector<8x128xf32> -> vector<8x128xf32>
    %c3_32 = arith.constant 3 : index
    %c0_33 = arith.constant 0 : index
    %c0_34 = arith.constant 0 : index
    %40 = vector.load %arg3[%c3_32, %c0_33, %c0_34] : memref<16x1x128xf32, #tpu.memory_space<vmem>>, vector<1x1x128xf32>
    %41 = vector.shape_cast %40 : vector<1x1x128xf32> to vector<1x128xf32>
    %42 = vector.broadcast %41 : vector<1x128xf32> to vector<8x128xf32>
    %43 = arith.addf %39, %42 : vector<8x128xf32>
    %cst_35 = arith.constant 0.000000e+00 : f32
    %44 = vector.broadcast %cst_35 : f32 to vector<8x128xf32>
    %45 = arith.maximumf %43, %44 : vector<8x128xf32>
    %46 = arith.truncf %45 : vector<8x128xf32> to vector<8x128xbf16>
    %c4 = arith.constant 4 : index
    %c0_36 = arith.constant 0 : index
    %c0_37 = arith.constant 0 : index
    %47 = vector.load %arg2[%c4, %c0_36, %c0_37] : memref<16x128x128xbf16, #tpu.memory_space<vmem>>, vector<1x128x128xbf16>
    %48 = vector.shape_cast %47 : vector<1x128x128xbf16> to vector<128x128xbf16>
    %cst_38 = arith.constant dense<0.000000e+00> : vector<8x128xf32>
    %49 = tpu.matmul %46, %48, %cst_38 {dimension_numbers = #tpu.dot_dimension_numbers<[1], [0], [0], [1], [0, 0, 1, 1], [], []>} : vector<8x128xbf16>, vector<128x128xbf16>, vector<8x128xf32> -> vector<8x128xf32>
    %c4_39 = arith.constant 4 : index
    %c0_40 = arith.constant 0 : index
    %c0_41 = arith.constant 0 : index
    %50 = vector.load %arg3[%c4_39, %c0_40, %c0_41] : memref<16x1x128xf32, #tpu.memory_space<vmem>>, vector<1x1x128xf32>
    %51 = vector.shape_cast %50 : vector<1x1x128xf32> to vector<1x128xf32>
    %52 = vector.broadcast %51 : vector<1x128xf32> to vector<8x128xf32>
    %53 = arith.addf %49, %52 : vector<8x128xf32>
    %54 = arith.addf %53, %35 : vector<8x128xf32>
    %cst_42 = arith.constant 0.000000e+00 : f32
    %55 = vector.broadcast %cst_42 : f32 to vector<8x128xf32>
    %56 = arith.maximumf %54, %55 : vector<8x128xf32>
    %57 = arith.truncf %56 : vector<8x128xf32> to vector<8x128xbf16>
    %c7 = arith.constant 7 : index
    %c0_43 = arith.constant 0 : index
    %c0_44 = arith.constant 0 : index
    %58 = vector.load %arg2[%c7, %c0_43, %c0_44] : memref<16x128x128xbf16, #tpu.memory_space<vmem>>, vector<1x128x128xbf16>
    %59 = vector.shape_cast %58 : vector<1x128x128xbf16> to vector<128x128xbf16>
    %cst_45 = arith.constant dense<0.000000e+00> : vector<8x128xf32>
    %60 = tpu.matmul %57, %59, %cst_45 {dimension_numbers = #tpu.dot_dimension_numbers<[1], [0], [0], [1], [0, 0, 1, 1], [], []>} : vector<8x128xbf16>, vector<128x128xbf16>, vector<8x128xf32> -> vector<8x128xf32>
    %c7_46 = arith.constant 7 : index
    %c0_47 = arith.constant 0 : index
    %c0_48 = arith.constant 0 : index
    %61 = vector.load %arg3[%c7_46, %c0_47, %c0_48] : memref<16x1x128xf32, #tpu.memory_space<vmem>>, vector<1x1x128xf32>
    %62 = vector.shape_cast %61 : vector<1x1x128xf32> to vector<1x128xf32>
    %63 = vector.broadcast %62 : vector<1x128xf32> to vector<8x128xf32>
    %64 = arith.addf %60, %63 : vector<8x128xf32>
    %65 = arith.truncf %56 : vector<8x128xf32> to vector<8x128xbf16>
    %c5 = arith.constant 5 : index
    %c0_49 = arith.constant 0 : index
    %c0_50 = arith.constant 0 : index
    %66 = vector.load %arg2[%c5, %c0_49, %c0_50] : memref<16x128x128xbf16, #tpu.memory_space<vmem>>, vector<1x128x128xbf16>
    %67 = vector.shape_cast %66 : vector<1x128x128xbf16> to vector<128x128xbf16>
    %cst_51 = arith.constant dense<0.000000e+00> : vector<8x128xf32>
    %68 = tpu.matmul %65, %67, %cst_51 {dimension_numbers = #tpu.dot_dimension_numbers<[1], [0], [0], [1], [0, 0, 1, 1], [], []>} : vector<8x128xbf16>, vector<128x128xbf16>, vector<8x128xf32> -> vector<8x128xf32>
    %c5_52 = arith.constant 5 : index
    %c0_53 = arith.constant 0 : index
    %c0_54 = arith.constant 0 : index
    %69 = vector.load %arg3[%c5_52, %c0_53, %c0_54] : memref<16x1x128xf32, #tpu.memory_space<vmem>>, vector<1x1x128xf32>
    %70 = vector.shape_cast %69 : vector<1x1x128xf32> to vector<1x128xf32>
    %71 = vector.broadcast %70 : vector<1x128xf32> to vector<8x128xf32>
    %72 = arith.addf %68, %71 : vector<8x128xf32>
    %cst_55 = arith.constant 0.000000e+00 : f32
    %73 = vector.broadcast %cst_55 : f32 to vector<8x128xf32>
    %74 = arith.maximumf %72, %73 : vector<8x128xf32>
    %75 = arith.truncf %74 : vector<8x128xf32> to vector<8x128xbf16>
    %c6 = arith.constant 6 : index
    %c0_56 = arith.constant 0 : index
    %c0_57 = arith.constant 0 : index
    %76 = vector.load %arg2[%c6, %c0_56, %c0_57] : memref<16x128x128xbf16, #tpu.memory_space<vmem>>, vector<1x128x128xbf16>
    %77 = vector.shape_cast %76 : vector<1x128x128xbf16> to vector<128x128xbf16>
    %cst_58 = arith.constant dense<0.000000e+00> : vector<8x128xf32>
    %78 = tpu.matmul %75, %77, %cst_58 {dimension_numbers = #tpu.dot_dimension_numbers<[1], [0], [0], [1], [0, 0, 1, 1], [], []>} : vector<8x128xbf16>, vector<128x128xbf16>, vector<8x128xf32> -> vector<8x128xf32>
    %c6_59 = arith.constant 6 : index
    %c0_60 = arith.constant 0 : index
    %c0_61 = arith.constant 0 : index
    %79 = vector.load %arg3[%c6_59, %c0_60, %c0_61] : memref<16x1x128xf32, #tpu.memory_space<vmem>>, vector<1x1x128xf32>
    %80 = vector.shape_cast %79 : vector<1x1x128xf32> to vector<1x128xf32>
    %81 = vector.broadcast %80 : vector<1x128xf32> to vector<8x128xf32>
    %82 = arith.addf %78, %81 : vector<8x128xf32>
    %83 = arith.addf %82, %64 : vector<8x128xf32>
    %cst_62 = arith.constant 0.000000e+00 : f32
    %84 = vector.broadcast %cst_62 : f32 to vector<8x128xf32>
    %85 = arith.maximumf %83, %84 : vector<8x128xf32>
    %86 = arith.truncf %85 : vector<8x128xf32> to vector<8x128xbf16>
    %c8 = arith.constant 8 : index
    %c0_63 = arith.constant 0 : index
    %c0_64 = arith.constant 0 : index
    %87 = vector.load %arg2[%c8, %c0_63, %c0_64] : memref<16x128x128xbf16, #tpu.memory_space<vmem>>, vector<1x128x128xbf16>
    %88 = vector.shape_cast %87 : vector<1x128x128xbf16> to vector<128x128xbf16>
    %cst_65 = arith.constant dense<0.000000e+00> : vector<8x128xf32>
    %89 = tpu.matmul %86, %88, %cst_65 {dimension_numbers = #tpu.dot_dimension_numbers<[1], [0], [0], [1], [0, 0, 1, 1], [], []>} : vector<8x128xbf16>, vector<128x128xbf16>, vector<8x128xf32> -> vector<8x128xf32>
    %c8_66 = arith.constant 8 : index
    %c0_67 = arith.constant 0 : index
    %c0_68 = arith.constant 0 : index
    %90 = vector.load %arg3[%c8_66, %c0_67, %c0_68] : memref<16x1x128xf32, #tpu.memory_space<vmem>>, vector<1x1x128xf32>
    %91 = vector.shape_cast %90 : vector<1x1x128xf32> to vector<1x128xf32>
    %92 = vector.broadcast %91 : vector<1x128xf32> to vector<8x128xf32>
    %93 = arith.addf %89, %92 : vector<8x128xf32>
    %cst_69 = arith.constant 0.000000e+00 : f32
    %94 = vector.broadcast %cst_69 : f32 to vector<8x128xf32>
    %95 = arith.maximumf %93, %94 : vector<8x128xf32>
    %96 = arith.truncf %95 : vector<8x128xf32> to vector<8x128xbf16>
    %c9 = arith.constant 9 : index
    %c0_70 = arith.constant 0 : index
    %c0_71 = arith.constant 0 : index
    %97 = vector.load %arg2[%c9, %c0_70, %c0_71] : memref<16x128x128xbf16, #tpu.memory_space<vmem>>, vector<1x128x128xbf16>
    %98 = vector.shape_cast %97 : vector<1x128x128xbf16> to vector<128x128xbf16>
    %cst_72 = arith.constant dense<0.000000e+00> : vector<8x128xf32>
    %99 = tpu.matmul %96, %98, %cst_72 {dimension_numbers = #tpu.dot_dimension_numbers<[1], [0], [0], [1], [0, 0, 1, 1], [], []>} : vector<8x128xbf16>, vector<128x128xbf16>, vector<8x128xf32> -> vector<8x128xf32>
    %c9_73 = arith.constant 9 : index
    %c0_74 = arith.constant 0 : index
    %c0_75 = arith.constant 0 : index
    %100 = vector.load %arg3[%c9_73, %c0_74, %c0_75] : memref<16x1x128xf32, #tpu.memory_space<vmem>>, vector<1x1x128xf32>
    %101 = vector.shape_cast %100 : vector<1x1x128xf32> to vector<1x128xf32>
    %102 = vector.broadcast %101 : vector<1x128xf32> to vector<8x128xf32>
    %103 = arith.addf %99, %102 : vector<8x128xf32>
    %104 = arith.addf %103, %85 : vector<8x128xf32>
    %cst_76 = arith.constant 0.000000e+00 : f32
    %105 = vector.broadcast %cst_76 : f32 to vector<8x128xf32>
    %106 = arith.maximumf %104, %105 : vector<8x128xf32>
    %107 = arith.truncf %106 : vector<8x128xf32> to vector<8x128xbf16>
    %c12 = arith.constant 12 : index
    %c0_77 = arith.constant 0 : index
    %c0_78 = arith.constant 0 : index
    %108 = vector.load %arg2[%c12, %c0_77, %c0_78] : memref<16x128x128xbf16, #tpu.memory_space<vmem>>, vector<1x128x128xbf16>
    %109 = vector.shape_cast %108 : vector<1x128x128xbf16> to vector<128x128xbf16>
    %cst_79 = arith.constant dense<0.000000e+00> : vector<8x128xf32>
    %110 = tpu.matmul %107, %109, %cst_79 {dimension_numbers = #tpu.dot_dimension_numbers<[1], [0], [0], [1], [0, 0, 1, 1], [], []>} : vector<8x128xbf16>, vector<128x128xbf16>, vector<8x128xf32> -> vector<8x128xf32>
    %c12_80 = arith.constant 12 : index
    %c0_81 = arith.constant 0 : index
    %c0_82 = arith.constant 0 : index
    %111 = vector.load %arg3[%c12_80, %c0_81, %c0_82] : memref<16x1x128xf32, #tpu.memory_space<vmem>>, vector<1x1x128xf32>
    %112 = vector.shape_cast %111 : vector<1x1x128xf32> to vector<1x128xf32>
    %113 = vector.broadcast %112 : vector<1x128xf32> to vector<8x128xf32>
    %114 = arith.addf %110, %113 : vector<8x128xf32>
    %115 = arith.truncf %106 : vector<8x128xf32> to vector<8x128xbf16>
    %c10 = arith.constant 10 : index
    %c0_83 = arith.constant 0 : index
    %c0_84 = arith.constant 0 : index
    %116 = vector.load %arg2[%c10, %c0_83, %c0_84] : memref<16x128x128xbf16, #tpu.memory_space<vmem>>, vector<1x128x128xbf16>
    %117 = vector.shape_cast %116 : vector<1x128x128xbf16> to vector<128x128xbf16>
    %cst_85 = arith.constant dense<0.000000e+00> : vector<8x128xf32>
    %118 = tpu.matmul %115, %117, %cst_85 {dimension_numbers = #tpu.dot_dimension_numbers<[1], [0], [0], [1], [0, 0, 1, 1], [], []>} : vector<8x128xbf16>, vector<128x128xbf16>, vector<8x128xf32> -> vector<8x128xf32>
    %c10_86 = arith.constant 10 : index
    %c0_87 = arith.constant 0 : index
    %c0_88 = arith.constant 0 : index
    %119 = vector.load %arg3[%c10_86, %c0_87, %c0_88] : memref<16x1x128xf32, #tpu.memory_space<vmem>>, vector<1x1x128xf32>
    %120 = vector.shape_cast %119 : vector<1x1x128xf32> to vector<1x128xf32>
    %121 = vector.broadcast %120 : vector<1x128xf32> to vector<8x128xf32>
    %122 = arith.addf %118, %121 : vector<8x128xf32>
    %cst_89 = arith.constant 0.000000e+00 : f32
    %123 = vector.broadcast %cst_89 : f32 to vector<8x128xf32>
    %124 = arith.maximumf %122, %123 : vector<8x128xf32>
    %125 = arith.truncf %124 : vector<8x128xf32> to vector<8x128xbf16>
    %c11 = arith.constant 11 : index
    %c0_90 = arith.constant 0 : index
    %c0_91 = arith.constant 0 : index
    %126 = vector.load %arg2[%c11, %c0_90, %c0_91] : memref<16x128x128xbf16, #tpu.memory_space<vmem>>, vector<1x128x128xbf16>
    %127 = vector.shape_cast %126 : vector<1x128x128xbf16> to vector<128x128xbf16>
    %cst_92 = arith.constant dense<0.000000e+00> : vector<8x128xf32>
    %128 = tpu.matmul %125, %127, %cst_92 {dimension_numbers = #tpu.dot_dimension_numbers<[1], [0], [0], [1], [0, 0, 1, 1], [], []>} : vector<8x128xbf16>, vector<128x128xbf16>, vector<8x128xf32> -> vector<8x128xf32>
    %c11_93 = arith.constant 11 : index
    %c0_94 = arith.constant 0 : index
    %c0_95 = arith.constant 0 : index
    %129 = vector.load %arg3[%c11_93, %c0_94, %c0_95] : memref<16x1x128xf32, #tpu.memory_space<vmem>>, vector<1x1x128xf32>
    %130 = vector.shape_cast %129 : vector<1x1x128xf32> to vector<1x128xf32>
    %131 = vector.broadcast %130 : vector<1x128xf32> to vector<8x128xf32>
    %132 = arith.addf %128, %131 : vector<8x128xf32>
    %133 = arith.addf %132, %114 : vector<8x128xf32>
    %cst_96 = arith.constant 0.000000e+00 : f32
    %134 = vector.broadcast %cst_96 : f32 to vector<8x128xf32>
    %135 = arith.maximumf %133, %134 : vector<8x128xf32>
    %136 = arith.truncf %135 : vector<8x128xf32> to vector<8x128xbf16>
    %c13 = arith.constant 13 : index
    %c0_97 = arith.constant 0 : index
    %c0_98 = arith.constant 0 : index
    %137 = vector.load %arg2[%c13, %c0_97, %c0_98] : memref<16x128x128xbf16, #tpu.memory_space<vmem>>, vector<1x128x128xbf16>
    %138 = vector.shape_cast %137 : vector<1x128x128xbf16> to vector<128x128xbf16>
    %cst_99 = arith.constant dense<0.000000e+00> : vector<8x128xf32>
    %139 = tpu.matmul %136, %138, %cst_99 {dimension_numbers = #tpu.dot_dimension_numbers<[1], [0], [0], [1], [0, 0, 1, 1], [], []>} : vector<8x128xbf16>, vector<128x128xbf16>, vector<8x128xf32> -> vector<8x128xf32>
    %c13_100 = arith.constant 13 : index
    %c0_101 = arith.constant 0 : index
    %c0_102 = arith.constant 0 : index
    %140 = vector.load %arg3[%c13_100, %c0_101, %c0_102] : memref<16x1x128xf32, #tpu.memory_space<vmem>>, vector<1x1x128xf32>
    %141 = vector.shape_cast %140 : vector<1x1x128xf32> to vector<1x128xf32>
    %142 = vector.broadcast %141 : vector<1x128xf32> to vector<8x128xf32>
    %143 = arith.addf %139, %142 : vector<8x128xf32>
    %cst_103 = arith.constant 0.000000e+00 : f32
    %144 = vector.broadcast %cst_103 : f32 to vector<8x128xf32>
    %145 = arith.maximumf %143, %144 : vector<8x128xf32>
    %146 = arith.truncf %145 : vector<8x128xf32> to vector<8x128xbf16>
    %c14 = arith.constant 14 : index
    %c0_104 = arith.constant 0 : index
    %c0_105 = arith.constant 0 : index
    %147 = vector.load %arg2[%c14, %c0_104, %c0_105] : memref<16x128x128xbf16, #tpu.memory_space<vmem>>, vector<1x128x128xbf16>
    %148 = vector.shape_cast %147 : vector<1x128x128xbf16> to vector<128x128xbf16>
    %cst_106 = arith.constant dense<0.000000e+00> : vector<8x128xf32>
    %149 = tpu.matmul %146, %148, %cst_106 {dimension_numbers = #tpu.dot_dimension_numbers<[1], [0], [0], [1], [0, 0, 1, 1], [], []>} : vector<8x128xbf16>, vector<128x128xbf16>, vector<8x128xf32> -> vector<8x128xf32>
    %c14_107 = arith.constant 14 : index
    %c0_108 = arith.constant 0 : index
    %c0_109 = arith.constant 0 : index
    %150 = vector.load %arg3[%c14_107, %c0_108, %c0_109] : memref<16x1x128xf32, #tpu.memory_space<vmem>>, vector<1x1x128xf32>
    %151 = vector.shape_cast %150 : vector<1x1x128xf32> to vector<1x128xf32>
    %152 = vector.broadcast %151 : vector<1x128xf32> to vector<8x128xf32>
    %153 = arith.addf %149, %152 : vector<8x128xf32>
    %154 = arith.addf %153, %135 : vector<8x128xf32>
    %cst_110 = arith.constant 0.000000e+00 : f32
    %155 = vector.broadcast %cst_110 : f32 to vector<8x128xf32>
    %156 = arith.maximumf %154, %155 : vector<8x128xf32>
    %157 = arith.truncf %156 : vector<8x128xf32> to vector<8x128xbf16>
    %c15 = arith.constant 15 : index
    %c0_111 = arith.constant 0 : index
    %c0_112 = arith.constant 0 : index
    %158 = vector.load %arg2[%c15, %c0_111, %c0_112] : memref<16x128x128xbf16, #tpu.memory_space<vmem>>, vector<1x128x128xbf16>
    %159 = vector.shape_cast %158 : vector<1x128x128xbf16> to vector<128x128xbf16>
    %cst_113 = arith.constant dense<0.000000e+00> : vector<8x128xf32>
    %160 = tpu.matmul %157, %159, %cst_113 {dimension_numbers = #tpu.dot_dimension_numbers<[1], [0], [0], [1], [0, 0, 1, 1], [], []>} : vector<8x128xbf16>, vector<128x128xbf16>, vector<8x128xf32> -> vector<8x128xf32>
    %c15_114 = arith.constant 15 : index
    %c0_115 = arith.constant 0 : index
    %c0_116 = arith.constant 0 : index
    %161 = vector.load %arg3[%c15_114, %c0_115, %c0_116] : memref<16x1x128xf32, #tpu.memory_space<vmem>>, vector<1x1x128xf32>
    %162 = vector.shape_cast %161 : vector<1x1x128xf32> to vector<1x128xf32>
    %163 = vector.broadcast %162 : vector<1x128xf32> to vector<8x128xf32>
    %164 = arith.addf %160, %163 : vector<8x128xf32>
    %c0_117 = arith.constant 0 : index
    %c0_118 = arith.constant 0 : index
    %165 = vector.load %arg4[%c0_117, %c0_118] : memref<8x128xf32, #tpu.memory_space<vmem>>, vector<8x128xf32>
    tpu.vector_store %arg4[%c0_117, %c0_118], %164 {strides = array<i32>} : memref<8x128xf32, #tpu.memory_space<vmem>>, vector<8x128xf32>,
    return
  }
  func.func @transform_0(%arg0: i32) -> (i32, i32) {
    %c0_i32 = arith.constant 0 : i32
    %c0_i32_0 = arith.constant 0 : i32
    return %arg0, %c0_i32 : i32, i32
  }
  func.func @transform_1(%arg0: i32) -> (i32, i32, i32) {
    %c0_i32 = arith.constant 0 : i32
    %c0_i32_0 = arith.constant 0 : i32
    %c0_i32_1 = arith.constant 0 : i32
    %c0_i32_2 = arith.constant 0 : i32
    return %c0_i32, %c0_i32_0, %c0_i32_1 : i32, i32, i32
  }
  func.func @transform_2(%arg0: i32) -> (i32, i32, i32) {
    %c0_i32 = arith.constant 0 : i32
    %c0_i32_0 = arith.constant 0 : i32
    %c0_i32_1 = arith.constant 0 : i32
    %c0_i32_2 = arith.constant 0 : i32
    return %c0_i32, %c0_i32_0, %c0_i32_1 : i32, i32, i32
  }
  func.func @transform_3(%arg0: i32) -> (i32, i32) {
    %c0_i32 = arith.constant 0 : i32
    %c0_i32_0 = arith.constant 0 : i32
    return %arg0, %c0_i32 : i32, i32
  }
}

</mosaic_0001>

<llo_original>
// kernel: _lambda_.1
$region0: #{_lambda_.1}
  #allocation0 [shape = 'u32[]', space=smem, size = 0x4, offset = 0x4, fixed_abs, tag = 'smem constant byte address 0x4 - core index']
  #allocation1 [shape = 'u32[144,128]{1,0:T(1,128)}', space=vmem, size = 0x12000, scoped, tag = 'internal scratch']
  #allocation2 [shape = 'f32[8,128]{1,0:T(8,128)}', space=vmem, size = 0x1000, scoped, tag = 'scratch operand']
  %s0 = inlined_call_operand.vmem [shape: f32[8,4], index: 0, kind: input, shape index: {}]
  %s1 = inlined_call_operand.hbm [shape: bf16[16,128,128], index: 1, kind: input, shape index: {}]
  %s2 = inlined_call_operand.vmem [shape: f32[16,1,128], index: 2, kind: input, shape index: {}]
  %s3 = inlined_call_operand.hbm [shape: f32[8,128], index: 3, kind: output, shape index: {}]
  %s4 = sld [smem:[#allocation0]]
  $region26: #{_lambda_.1} parent=0
    _
  %s6 = ssub.s32 1, %s4
  %s7 = scalar_select 0, %s6, %s4
  $region1: #{_lambda_.1} parent=0
    #allocation3 [shape = 'u8[524288]{0}', space=vmem, size = 0x80000, scoped, tag = 'input window, operand 1, single buffered']
    #allocation4 [shape = 's32[1]{0}', space=sflag, size = 0x4, scoped, tag = 'scoped memory for _lambda_.1']
    #allocation5 [shape = 's32[1]{0}', space=sflag, size = 0x4, scoped, tag = 'scoped memory for _lambda_.1']
    #allocation6 [shape = 'u8[4096]{0}', space=vmem, size = 0x1000, scoped, tag = 'output window, operand 0, single buffered']
    %8 = vsyncpa [#allocation4], 0
    %9 = vsyncpa [#allocation5], 0
    // Predicated region
    $region2: #{_lambda_.1} parent=1 // pred_check
      _
    $region3: #{_lambda_.1} parent=1 // pred_check_branch
      %11 = sbr.rel (0) target = $region5
    $region4: #{_lambda_.1} parent=1 // pred_region
      _
    $region5: #{_lambda_.1} parent=1 // pred_fallthru
      _
    // Predicated region
    $region6: #{_lambda_.1} parent=1 // pred_check
      _
    $region7: #{_lambda_.1} parent=1 // pred_check_branch
      %13 = sbr.rel (0) target = $region9
    $region8: #{_lambda_.1} parent=1 // pred_region
      %s15 = ssub.s32 16384, 16384
      %16 = vsyncadd [#allocation4], %s15
      %s17 = sshll.u32 [#allocation3], 4
      %s18 = int_to_ptr.vmem [resolvable:$true] %s17
      %23 = dma.hbm_to_vmem [thread:$0]  %s1, 16384, %s18, [#allocation4], 64, 64, 4
    $region9: #{_lambda_.1} parent=1 // pred_fallthru
      _
    // Predicated region
    $region10: #{_lambda_.1} parent=1 // pred_check
      _
    $region11: #{_lambda_.1} parent=1 // pred_check_branch
      %25 = sbr.rel (0) target = $region13
    $region12: #{_lambda_.1} parent=1 // pred_region
      _
    $region13: #{_lambda_.1} parent=1 // pred_fallthru
      _
    // Predicated region
    $region14: #{_lambda_.1} parent=1 // pred_check
      _
    $region15: #{_lambda_.1} parent=1 // pred_check_branch
      %27 = sbr.rel (0) target = $region17
    $region16: #{_lambda_.1} parent=1 // pred_region
      %28 = dma.done [#allocation4], 16384
    $region17: #{_lambda_.1} parent=1 // pred_fallthru
      _
    %30 = vst [vmem:[#allocation2] sm:$0xff] 0.0
    %v31 = vld [vmem:[%s0] sm:$0xff]
    %vm32 = vcmask 31744
    %33 = vst.msk [vmem:[#allocation2] sm:$0xff] %vm32, %v31
    %v34 = vld [vmem:[#allocation2] sm:$0xff]
    %v35 = vpack.c.bf16 %v34, %v34
    %v36 = vld [vmem:[#allocation3] sm:$0xf]
    %v37 = vld [vmem:[#allocation3 + $0x4] sm:$0xf]
    %v38 = vld [vmem:[#allocation3 + $0x8] sm:$0xf]
    %v39 = vld [vmem:[#allocation3 + $0xc] sm:$0xf]
    %v40 = vld [vmem:[#allocation3 + $0x10] sm:$0xf]
    %v41 = vld [vmem:[#allocation3 + $0x14] sm:$0xf]
    %v42 = vld [vmem:[#allocation3 + $0x18] sm:$0xf]
    %v43 = vld [vmem:[#allocation3 + $0x1c] sm:$0xf]
    %v44 = vld [vmem:[#allocation3 + $0x20] sm:$0xf]
    %v45 = vld [vmem:[#allocation3 + $0x24] sm:$0xf]
    %v46 = vld [vmem:[#allocation3 + $0x28] sm:$0xf]
    %v47 = vld [vmem:[#allocation3 + $0x2c] sm:$0xf]
    %v48 = vld [vmem:[#allocation3 + $0x30] sm:$0xf]
    %v49 = vld [vmem:[#allocation3 + $0x34] sm:$0xf]
    %v50 = vld [vmem:[#allocation3 + $0x38] sm:$0xf]
    %v51 = vld [vmem:[#allocation3 + $0x3c] sm:$0xf]
    %v52 = vld [vmem:[%s2] sm:$0x1]
    %v54 = vlaneseq
    %v55 = vshrl.u32 %v54, 7
    %v56 = vsub.s32 0, %v55
    %v57 = vrot.slane %v52, %v56
    %v75 = vunpack.c.l.b16 %v36
    %v76 = vunpack.c.l.b16 %v37
    %v77 = vunpack.c.l.b16 %v38
    %v78 = vunpack.c.l.b16 %v39
    %v79 = vunpack.c.l.b16 %v40
    %v80 = vunpack.c.l.b16 %v41
    %v81 = vunpack.c.l.b16 %v42
    %v82 = vunpack.c.l.b16 %v43
    %v83 = vunpack.c.l.b16 %v44
    %v84 = vunpack.c.l.b16 %v45
    %v85 = vunpack.c.l.b16 %v46
    %v86 = vunpack.c.l.b16 %v47
    %v87 = vunpack.c.l.b16 %v48
    %v88 = vunpack.c.l.b16 %v49
    %v89 = vunpack.c.l.b16 %v50
    %v90 = vunpack.c.l.b16 %v51
    %v91 = vpack.c.b16 %v76, %v75
    %v92 = vpack.c.b16 %v78, %v77
    %v93 = vpack.c.b16 %v80, %v79
    %v94 = vpack.c.b16 %v82, %v81
    %v95 = vpack.c.b16 %v84, %v83
    %v96 = vpack.c.b16 %v86, %v85
    %v97 = vpack.c.b16 %v88, %v87
    %v98 = vpack.c.b16 %v90, %v89
    %107 = vmatprep.subr.bf16.mxu0 0
    %108 = vmatpush1.bf16.msra.mxu0 %v91
    %109 = vmatprep.subr.bf16.mxu0 0
    %110 = vmatpush1.bf16.msra.mxu0 %v92
    %111 = vmatprep.subr.bf16.mxu0 0
    %112 = vmatpush1.bf16.msra.mxu0 %v93
    %113 = vmatprep.subr.bf16.mxu0 0
    %114 = vmatpush1.bf16.msra.mxu0 %v94
    %115 = vmatprep.subr.bf16.mxu0 0
    %116 = vmatpush1.bf16.msra.mxu0 %v95
    %117 = vmatprep.subr.bf16.mxu0 0
    %118 = vmatpush1.bf16.msra.mxu0 %v96
    %119 = vmatprep.subr.bf16.mxu0 0
    %120 = vmatpush1.bf16.msra.mxu0 %v97
    %121 = vmatprep.subr.bf16.mxu0 0
    %122 = vmatpush1.bf16.msra.mxu0 %v98
    %123 = vmatprep.subr.bf16.mxu0 0
    %124 = vmatpush1.bf16.msra.mxu0 0
    %125 = vmatprep.subr.bf16.mxu0 0
    %126 = vmatpush1.bf16.msra.mxu0 0
    %127 = vmatprep.subr.bf16.mxu0 0
    %128 = vmatpush1.bf16.msra.mxu0 0
    %129 = vmatprep.subr.bf16.mxu0 0
    %130 = vmatpush1.bf16.msra.mxu0 0
    %131 = vmatprep.subr.bf16.mxu0 0
    %132 = vmatpush1.bf16.msra.mxu0 0
    %133 = vmatprep.subr.bf16.mxu0 0
    %134 = vmatpush1.bf16.msra.mxu0 0
    %135 = vmatprep.subr.bf16.mxu0 0
    %136 = vmatpush1.bf16.msra.mxu0 0
    %137 = vmatprep.subr.bf16.mxu0 0
    %138 = vmatpush1.bf16.msra.mxu0 0
    %139 = vmatprep.mubr.bf16.mxu0 0
    %140 = vmatmul.mubr.bf16.gmra.mrb[0].mxu0 %v35
    %v141 = vpop.f32.mrb[0].mxu0
    %v142 = vadd.f32 %v57, %v141
    %v143 = vpop.f32.mrb[0].mxu0
    %v144 = vpop.f32.mrb[0].mxu0
    %v145 = vpop.f32.mrb[0].mxu0
    %146 = vdwg.mxu0
    %v147 = vmax.f32 %v142, 0.0
    %v148 = vpack.c.bf16 %v147, %v147
    %s149 = scalar_lea.vmem [#allocation3], 64
    %v150 = vld [vmem:[%s149] sm:$0xf]
    %v151 = vld [vmem:[%s149 + $0x4] sm:$0xf]
    %v152 = vld [vmem:[%s149 + $0x8] sm:$0xf]
    %v153 = vld [vmem:[%s149 + $0xc] sm:$0xf]
    %v154 = vld [vmem:[%s149 + $0x10] sm:$0xf]
    %v155 = vld [vmem:[%s149 + $0x14] sm:$0xf]
    %v156 = vld [vmem:[%s149 + $0x18] sm:$0xf]
    %v157 = vld [vmem:[%s149 + $0x1c] sm:$0xf]
    %v158 = vld [vmem:[%s149 + $0x20] sm:$0xf]
    %v159 = vld [vmem:[%s149 + $0x24] sm:$0xf]
    %v160 = vld [vmem:[%s149 + $0x28] sm:$0xf]
    %v161 = vld [vmem:[%s149 + $0x2c] sm:$0xf]
    %v162 = vld [vmem:[%s149 + $0x30] sm:$0xf]
    %v163 = vld [vmem:[%s149 + $0x34] sm:$0xf]
    %v164 = vld [vmem:[%s149 + $0x38] sm:$0xf]
    %v165 = vld [vmem:[%s149 + $0x3c] sm:$0xf]
    %s166 = scalar_lea.vmem %s2, 1
    %v167 = vld [vmem:[%s166] sm:$0x1]
    %v169 = vlaneseq
    %v170 = vshrl.u32 %v169, 7
    %v171 = vsub.s32 0, %v170
    %v172 = vrot.slane %v167, %v171
    %v190 = vunpack.c.l.b16 %v150
    %v191 = vunpack.c.l.b16 %v151
    %v192 = vunpack.c.l.b16 %v152
    %v193 = vunpack.c.l.b16 %v153
    %v194 = vunpack.c.l.b16 %v154
    %v195 = vunpack.c.l.b16 %v155
    %v196 = vunpack.c.l.b16 %v156
    %v197 = vunpack.c.l.b16 %v157
    %v198 = vunpack.c.l.b16 %v158
    %v199 = vunpack.c.l.b16 %v159
    %v200 = vunpack.c.l.b16 %v160
    %v201 = vunpack.c.l.b16 %v161
    %v202 = vunpack.c.l.b16 %v162
    %v203 = vunpack.c.l.b16 %v163
    %v204 = vunpack.c.l.b16 %v164
    %v205 = vunpack.c.l.b16 %v165
    %v206 = vpack.c.b16 %v191, %v190
    %v207 = vpack.c.b16 %v193, %v192
    %v208 = vpack.c.b16 %v195, %v194
    %v209 = vpack.c.b16 %v197, %v196
    %v210 = vpack.c.b16 %v199, %v198
    %v211 = vpack.c.b16 %v201, %v200
    %v212 = vpack.c.b16 %v203, %v202
    %v213 = vpack.c.b16 %v205, %v204
    %222 = vmatprep.subr.bf16.mxu0 0
    %223 = vmatpush1.bf16.msra.mxu0 %v206
    %224 = vmatprep.subr.bf16.mxu0 0
    %225 = vmatpush1.bf16.msra.mxu0 %v207
    %226 = vmatprep.subr.bf16.mxu0 0
    %227 = vmatpush1.bf16.msra.mxu0 %v208
    %228 = vmatprep.subr.bf16.mxu0 0
    %229 = vmatpush1.bf16.msra.mxu0 %v209
    %230 = vmatprep.subr.bf16.mxu0 0
    %231 = vmatpush1.bf16.msra.mxu0 %v210
    %232 = vmatprep.subr.bf16.mxu0 0
    %233 = vmatpush1.bf16.msra.mxu0 %v211
    %234 = vmatprep.subr.bf16.mxu0 0
    %235 = vmatpush1.bf16.msra.mxu0 %v212
    %236 = vmatprep.subr.bf16.mxu0 0
    %237 = vmatpush1.bf16.msra.mxu0 %v213
    %238 = vmatprep.subr.bf16.mxu0 0
    %239 = vmatpush1.bf16.msra.mxu0 0
    %240 = vmatprep.subr.bf16.mxu0 0
    %241 = vmatpush1.bf16.msra.mxu0 0
    %242 = vmatprep.subr.bf16.mxu0 0
    %243 = vmatpush1.bf16.msra.mxu0 0
    %244 = vmatprep.subr.bf16.mxu0 0
    %245 = vmatpush1.bf16.msra.mxu0 0
    %246 = vmatprep.subr.bf16.mxu0 0
    %247 = vmatpush1.bf16.msra.mxu0 0
    %248 = vmatprep.subr.bf16.mxu0 0
    %249 = vmatpush1.bf16.msra.mxu0 0
    %250 = vmatprep.subr.bf16.mxu0 0
    %251 = vmatpush1.bf16.msra.mxu0 0
    %252 = vmatprep.subr.bf16.mxu0 0
    %253 = vmatpush1.bf16.msra.mxu0 0
    %254 = vmatprep.mubr.bf16.mxu0 0
    %255 = vmatmul.mubr.bf16.gmra.mrb[0].mxu0 %v148
    %v256 = vpop.f32.mrb[0].mxu0
    %v257 = vadd.f32 %v172, %v256
    %v258 = vpop.f32.mrb[0].mxu0
    %v259 = vpop.f32.mrb[0].mxu0
    %v260 = vpop.f32.mrb[0].mxu0
    %261 = vdwg.mxu0
    %v262 = vmax.f32 %v257, 0.0
    %v263 = vpack.c.bf16 %v262, %v262
    %s264 = scalar_lea.vmem [#allocation3], 128
    %v265 = vld [vmem:[%s264] sm:$0xf]
    %v266 = vld [vmem:[%s264 + $0x4] sm:$0xf]
    %v267 = vld [vmem:[%s264 + $0x8] sm:$0xf]
    %v268 = vld [vmem:[%s264 + $0xc] sm:$0xf]
    %v269 = vld [vmem:[%s264 + $0x10] sm:$0xf]
    %v270 = vld [vmem:[%s264 + $0x14] sm:$0xf]
    %v271 = vld [vmem:[%s264 + $0x18] sm:$0xf]
    %v272 = vld [vmem:[%s264 + $0x1c] sm:$0xf]
    %v273 = vld [vmem:[%s264 + $0x20] sm:$0xf]
    %v274 = vld [vmem:[%s264 + $0x24] sm:$0xf]
    %v275 = vld [vmem:[%s264 + $0x28] sm:$0xf]
    %v276 = vld [vmem:[%s264 + $0x2c] sm:$0xf]
    %v277 = vld [vmem:[%s264 + $0x30] sm:$0xf]
    %v278 = vld [vmem:[%s264 + $0x34] sm:$0xf]
    %v279 = vld [vmem:[%s264 + $0x38] sm:$0xf]
    %v280 = vld [vmem:[%s264 + $0x3c] sm:$0xf]
    %s281 = scalar_lea.vmem %s2, 2
    %v282 = vld [vmem:[%s281] sm:$0x1]
    %v284 = vlaneseq
    %v285 = vshrl.u32 %v284, 7
    %v286 = vsub.s32 0, %v285
    %v287 = vrot.slane %v282, %v286
    %v305 = vunpack.c.l.b16 %v265
    %v306 = vunpack.c.l.b16 %v266
    %v307 = vunpack.c.l.b16 %v267
    %v308 = vunpack.c.l.b16 %v268
    %v309 = vunpack.c.l.b16 %v269
    %v310 = vunpack.c.l.b16 %v270
    %v311 = vunpack.c.l.b16 %v271
    %v312 = vunpack.c.l.b16 %v272
    %v313 = vunpack.c.l.b16 %v273
    %v314 = vunpack.c.l.b16 %v274
    %v315 = vunpack.c.l.b16 %v275
    %v316 = vunpack.c.l.b16 %v276
    %v317 = vunpack.c.l.b16 %v277
    %v318 = vunpack.c.l.b16 %v278
    %v319 = vunpack.c.l.b16 %v279
    %v320 = vunpack.c.l.b16 %v280
    %v321 = vpack.c.b16 %v306, %v305
    %v322 = vpack.c.b16 %v308, %v307
    %v323 = vpack.c.b16 %v310, %v309
    %v324 = vpack.c.b16 %v312, %v311
    %v325 = vpack.c.b16 %v314, %v313
    %v326 = vpack.c.b16 %v316, %v315
    %v327 = vpack.c.b16 %v318, %v317
    %v328 = vpack.c.b16 %v320, %v319
    %337 = vmatprep.subr.bf16.mxu0 0
    %338 = vmatpush1.bf16.msra.mxu0 %v321
    %339 = vmatprep.subr.bf16.mxu0 0
    %340 = vmatpush1.bf16.msra.mxu0 %v322
    %341 = vmatprep.subr.bf16.mxu0 0
    %342 = vmatpush1.bf16.msra.mxu0 %v323
    %343 = vmatprep.subr.bf16.mxu0 0
    %344 = vmatpush1.bf16.msra.mxu0 %v324
    %345 = vmatprep.subr.bf16.mxu0 0
    %346 = vmatpush1.bf16.msra.mxu0 %v325
    %347 = vmatprep.subr.bf16.mxu0 0
    %348 = vmatpush1.bf16.msra.mxu0 %v326
    %349 = vmatprep.subr.bf16.mxu0 0
    %350 = vmatpush1.bf16.msra.mxu0 %v327
    %351 = vmatprep.subr.bf16.mxu0 0
    %352 = vmatpush1.bf16.msra.mxu0 %v328
    %353 = vmatprep.subr.bf16.mxu0 0
    %354 = vmatpush1.bf16.msra.mxu0 0
    %355 = vmatprep.subr.bf16.mxu0 0
    %356 = vmatpush1.bf16.msra.mxu0 0
    %357 = vmatprep.subr.bf16.mxu0 0
    %358 = vmatpush1.bf16.msra.mxu0 0
    %359 = vmatprep.subr.bf16.mxu0 0
    %360 = vmatpush1.bf16.msra.mxu0 0
    %361 = vmatprep.subr.bf16.mxu0 0
    %362 = vmatpush1.bf16.msra.mxu0 0
    %363 = vmatprep.subr.bf16.mxu0 0
    %364 = vmatpush1.bf16.msra.mxu0 0
    %365 = vmatprep.subr.bf16.mxu0 0
    %366 = vmatpush1.bf16.msra.mxu0 0
    %367 = vmatprep.subr.bf16.mxu0 0
    %368 = vmatpush1.bf16.msra.mxu0 0
    %369 = vmatprep.mubr.bf16.mxu0 0
    %370 = vmatmul.mubr.bf16.gmra.mrb[0].mxu0 %v263
    %v371 = vpop.f32.mrb[0].mxu0
    %v372 = vadd.f32 %v287, %v371
    %v373 = vpop.f32.mrb[0].mxu0
    %v374 = vpop.f32.mrb[0].mxu0
    %v375 = vpop.f32.mrb[0].mxu0
    %376 = vdwg.mxu0
    %v377 = vadd.f32 %v372, %v147
    %v378 = vmax.f32 %v377, 0.0
    %v379 = vpack.c.bf16 %v378, %v378
    %s380 = scalar_lea.vmem [#allocation3], 192
    %v381 = vld [vmem:[%s380] sm:$0xf]
    %v382 = vld [vmem:[%s380 + $0x4] sm:$0xf]
    %v383 = vld [vmem:[%s380 + $0x8] sm:$0xf]
    %v384 = vld [vmem:[%s380 + $0xc] sm:$0xf]
    %v385 = vld [vmem:[%s380 + $0x10] sm:$0xf]
    %v386 = vld [vmem:[%s380 + $0x14] sm:$0xf]
    %v387 = vld [vmem:[%s380 + $0x18] sm:$0xf]
    %v388 = vld [vmem:[%s380 + $0x1c] sm:$0xf]
    %v389 = vld [vmem:[%s380 + $0x20] sm:$0xf]
    %v390 = vld [vmem:[%s380 + $0x24] sm:$0xf]
    %v391 = vld [vmem:[%s380 + $0x28] sm:$0xf]
    %v392 = vld [vmem:[%s380 + $0x2c] sm:$0xf]
    %v393 = vld [vmem:[%s380 + $0x30] sm:$0xf]
    %v394 = vld [vmem:[%s380 + $0x34] sm:$0xf]
    %v395 = vld [vmem:[%s380 + $0x38] sm:$0xf]
    %v396 = vld [vmem:[%s380 + $0x3c] sm:$0xf]
    %s397 = scalar_lea.vmem %s2, 3
    %v398 = vld [vmem:[%s397] sm:$0x1]
    %v400 = vlaneseq
    %v401 = vshrl.u32 %v400, 7
    %v402 = vsub.s32 0, %v401
    %v403 = vrot.slane %v398, %v402
    %v421 = vunpack.c.l.b16 %v381
    %v422 = vunpack.c.l.b16 %v382
    %v423 = vunpack.c.l.b16 %v383
    %v424 = vunpack.c.l.b16 %v384
    %v425 = vunpack.c.l.b16 %v385
    %v426 = vunpack.c.l.b16 %v386
    %v427 = vunpack.c.l.b16 %v387
    %v428 = vunpack.c.l.b16 %v388
    %v429 = vunpack.c.l.b16 %v389
    %v430 = vunpack.c.l.b16 %v390
    %v431 = vunpack.c.l.b16 %v391
    %v432 = vunpack.c.l.b16 %v392
    %v433 = vunpack.c.l.b16 %v393
    %v434 = vunpack.c.l.b16 %v394
    %v435 = vunpack.c.l.b16 %v395
    %v436 = vunpack.c.l.b16 %v396
    %v437 = vpack.c.b16 %v422, %v421
    %v438 = vpack.c.b16 %v424, %v423
    %v439 = vpack.c.b16 %v426, %v425
    %v440 = vpack.c.b16 %v428, %v427
    %v441 = vpack.c.b16 %v430, %v429
    %v442 = vpack.c.b16 %v432, %v431
    %v443 = vpack.c.b16 %v434, %v433
    %v444 = vpack.c.b16 %v436, %v435
    %453 = vmatprep.subr.bf16.mxu0 0
    %454 = vmatpush1.bf16.msra.mxu0 %v437
    %455 = vmatprep.subr.bf16.mxu0 0
    %456 = vmatpush1.bf16.msra.mxu0 %v438
    %457 = vmatprep.subr.bf16.mxu0 0
    %458 = vmatpush1.bf16.msra.mxu0 %v439
    %459 = vmatprep.subr.bf16.mxu0 0
    %460 = vmatpush1.bf16.msra.mxu0 %v440
    %461 = vmatprep.subr.bf16.mxu0 0
    %462 = vmatpush1.bf16.msra.mxu0 %v441
    %463 = vmatprep.subr.bf16.mxu0 0
    %464 = vmatpush1.bf16.msra.mxu0 %v442
    %465 = vmatprep.subr.bf16.mxu0 0
    %466 = vmatpush1.bf16.msra.mxu0 %v443
    %467 = vmatprep.subr.bf16.mxu0 0
    %468 = vmatpush1.bf16.msra.mxu0 %v444
    %469 = vmatprep.subr.bf16.mxu0 0
    %470 = vmatpush1.bf16.msra.mxu0 0
    %471 = vmatprep.subr.bf16.mxu0 0
    %472 = vmatpush1.bf16.msra.mxu0 0
    %473 = vmatprep.subr.bf16.mxu0 0
    %474 = vmatpush1.bf16.msra.mxu0 0
    %475 = vmatprep.subr.bf16.mxu0 0
    %476 = vmatpush1.bf16.msra.mxu0 0
    %477 = vmatprep.subr.bf16.mxu0 0
    %478 = vmatpush1.bf16.msra.mxu0 0
    %479 = vmatprep.subr.bf16.mxu0 0
    %480 = vmatpush1.bf16.msra.mxu0 0
    %481 = vmatprep.subr.bf16.mxu0 0
    %482 = vmatpush1.bf16.msra.mxu0 0
    %483 = vmatprep.subr.bf16.mxu0 0
    %484 = vmatpush1.bf16.msra.mxu0 0
    %485 = vmatprep.mubr.bf16.mxu0 0
    %486 = vmatmul.mubr.bf16.gmra.mrb[0].mxu0 %v379
    %v487 = vpop.f32.mrb[0].mxu0
    %v488 = vadd.f32 %v403, %v487
    %v489 = vpop.f32.mrb[0].mxu0
    %v490 = vpop.f32.mrb[0].mxu0
    %v491 = vpop.f32.mrb[0].mxu0
    %492 = vdwg.mxu0
    %v493 = vmax.f32 %v488, 0.0
    %v494 = vpack.c.bf16 %v493, %v493
    %s495 = scalar_lea.vmem [#allocation3], 256
    %v496 = vld [vmem:[%s495] sm:$0xf]
    %v497 = vld [vmem:[%s495 + $0x4] sm:$0xf]
    %v498 = vld [vmem:[%s495 + $0x8] sm:$0xf]
    %v499 = vld [vmem:[%s495 + $0xc] sm:$0xf]
    %v500 = vld [vmem:[%s495 + $0x10] sm:$0xf]
    %v501 = vld [vmem:[%s495 + $0x14] sm:$0xf]
    %v502 = vld [vmem:[%s495 + $0x18] sm:$0xf]
    %v503 = vld [vmem:[%s495 + $0x1c] sm:$0xf]
    %v504 = vld [vmem:[%s495 + $0x20] sm:$0xf]
    %v505 = vld [vmem:[%s495 + $0x24] sm:$0xf]
    %v506 = vld [vmem:[%s495 + $0x28] sm:$0xf]
    %v507 = vld [vmem:[%s495 + $0x2c] sm:$0xf]
    %v508 = vld [vmem:[%s495 + $0x30] sm:$0xf]
    %v509 = vld [vmem:[%s495 + $0x34] sm:$0xf]
    %v510 = vld [vmem:[%s495 + $0x38] sm:$0xf]
    %v511 = vld [vmem:[%s495 + $0x3c] sm:$0xf]
    %s512 = scalar_lea.vmem %s2, 4
    %v513 = vld [vmem:[%s512] sm:$0x1]
    %v515 = vlaneseq
    %v516 = vshrl.u32 %v515, 7
    %v517 = vsub.s32 0, %v516
    %v518 = vrot.slane %v513, %v517
    %v536 = vunpack.c.l.b16 %v496
    %v537 = vunpack.c.l.b16 %v497
    %v538 = vunpack.c.l.b16 %v498
    %v539 = vunpack.c.l.b16 %v499
    %v540 = vunpack.c.l.b16 %v500
    %v541 = vunpack.c.l.b16 %v501
    %v542 = vunpack.c.l.b16 %v502
    %v543 = vunpack.c.l.b16 %v503
    %v544 = vunpack.c.l.b16 %v504
    %v545 = vunpack.c.l.b16 %v505
    %v546 = vunpack.c.l.b16 %v506
    %v547 = vunpack.c.l.b16 %v507
    %v548 = vunpack.c.l.b16 %v508
    %v549 = vunpack.c.l.b16 %v509
    %v550 = vunpack.c.l.b16 %v510
    %v551 = vunpack.c.l.b16 %v511
    %v552 = vpack.c.b16 %v537, %v536
    %v553 = vpack.c.b16 %v539, %v538
    %v554 = vpack.c.b16 %v541, %v540
    %v555 = vpack.c.b16 %v543, %v542
    %v556 = vpack.c.b16 %v545, %v544
    %v557 = vpack.c.b16 %v547, %v546
    %v558 = vpack.c.b16 %v549, %v548
    %v559 = vpack.c.b16 %v551, %v550
    %568 = vmatprep.subr.bf16.mxu0 0
    %569 = vmatpush1.bf16.msra.mxu0 %v552
    %570 = vmatprep.subr.bf16.mxu0 0
    %571 = vmatpush1.bf16.msra.mxu0 %v553
    %572 = vmatprep.subr.bf16.mxu0 0
    %573 = vmatpush1.bf16.msra.mxu0 %v554
    %574 = vmatprep.subr.bf16.mxu0 0
    %575 = vmatpush1.bf16.msra.mxu0 %v555
    %576 = vmatprep.subr.bf16.mxu0 0
    %577 = vmatpush1.bf16.msra.mxu0 %v556
    %578 = vmatprep.subr.bf16.mxu0 0
    %579 = vmatpush1.bf16.msra.mxu0 %v557
    %580 = vmatprep.subr.bf16.mxu0 0
    %581 = vmatpush1.bf16.msra.mxu0 %v558
    %582 = vmatprep.subr.bf16.mxu0 0
    %583 = vmatpush1.bf16.msra.mxu0 %v559
    %584 = vmatprep.subr.bf16.mxu0 0
    %585 = vmatpush1.bf16.msra.mxu0 0
    %586 = vmatprep.subr.bf16.mxu0 0
    %587 = vmatpush1.bf16.msra.mxu0 0
    %588 = vmatprep.subr.bf16.mxu0 0
    %589 = vmatpush1.bf16.msra.mxu0 0
    %590 = vmatprep.subr.bf16.mxu0 0
    %591 = vmatpush1.bf16.msra.mxu0 0
    %592 = vmatprep.subr.bf16.mxu0 0
    %593 = vmatpush1.bf16.msra.mxu0 0
    %594 = vmatprep.subr.bf16.mxu0 0
    %595 = vmatpush1.bf16.msra.mxu0 0
    %596 = vmatprep.subr.bf16.mxu0 0
    %597 = vmatpush1.bf16.msra.mxu0 0
    %598 = vmatprep.subr.bf16.mxu0 0
    %599 = vmatpush1.bf16.msra.mxu0 0
    %600 = vmatprep.mubr.bf16.mxu0 0
    %601 = vmatmul.mubr.bf16.gmra.mrb[0].mxu0 %v494
    %v602 = vpop.f32.mrb[0].mxu0
    %v603 = vadd.f32 %v518, %v602
    %v604 = vpop.f32.mrb[0].mxu0
    %v605 = vpop.f32.mrb[0].mxu0
    %v606 = vpop.f32.mrb[0].mxu0
    %607 = vdwg.mxu0
    %v608 = vadd.f32 %v603, %v378
    %v609 = vmax.f32 %v608, 0.0
    %v610 = vpack.c.bf16 %v609, %v609
    %s611 = scalar_lea.vmem [#allocation3], 448
    %v612 = vld [vmem:[%s611] sm:$0xf]
    %v613 = vld [vmem:[%s611 + $0x4] sm:$0xf]
    %v614 = vld [vmem:[%s611 + $0x8] sm:$0xf]
    %v615 = vld [vmem:[%s611 + $0xc] sm:$0xf]
    %v616 = vld [vmem:[%s611 + $0x10] sm:$0xf]
    %v617 = vld [vmem:[%s611 + $0x14] sm:$0xf]
    %v618 = vld [vmem:[%s611 + $0x18] sm:$0xf]
    %v619 = vld [vmem:[%s611 + $0x1c] sm:$0xf]
    %v620 = vld [vmem:[%s611 + $0x20] sm:$0xf]
    %v621 = vld [vmem:[%s611 + $0x24] sm:$0xf]
    %v622 = vld [vmem:[%s611 + $0x28] sm:$0xf]
    %v623 = vld [vmem:[%s611 + $0x2c] sm:$0xf]
    %v624 = vld [vmem:[%s611 + $0x30] sm:$0xf]
    %v625 = vld [vmem:[%s611 + $0x34] sm:$0xf]
    %v626 = vld [vmem:[%s611 + $0x38] sm:$0xf]
    %v627 = vld [vmem:[%s611 + $0x3c] sm:$0xf]
    %s628 = scalar_lea.vmem %s2, 7
    %v629 = vld [vmem:[%s628] sm:$0x1]
    %v631 = vlaneseq
    %v632 = vshrl.u32 %v631, 7
    %v633 = vsub.s32 0, %v632
    %v634 = vrot.slane %v629, %v633
    %v652 = vunpack.c.l.b16 %v612
    %v653 = vunpack.c.l.b16 %v613
    %v654 = vunpack.c.l.b16 %v614
    %v655 = vunpack.c.l.b16 %v615
    %v656 = vunpack.c.l.b16 %v616
    %v657 = vunpack.c.l.b16 %v617
    %v658 = vunpack.c.l.b16 %v618
    %v659 = vunpack.c.l.b16 %v619
    %v660 = vunpack.c.l.b16 %v620
    %v661 = vunpack.c.l.b16 %v621
    %v662 = vunpack.c.l.b16 %v622
    %v663 = vunpack.c.l.b16 %v623
    %v664 = vunpack.c.l.b16 %v624
    %v665 = vunpack.c.l.b16 %v625
    %v666 = vunpack.c.l.b16 %v626
    %v667 = vunpack.c.l.b16 %v627
    %v668 = vpack.c.b16 %v653, %v652
    %v669 = vpack.c.b16 %v655, %v654
    %v670 = vpack.c.b16 %v657, %v656
    %v671 = vpack.c.b16 %v659, %v658
    %v672 = vpack.c.b16 %v661, %v660
    %v673 = vpack.c.b16 %v663, %v662
    %v674 = vpack.c.b16 %v665, %v664
    %v675 = vpack.c.b16 %v667, %v666
    %684 = vmatprep.subr.bf16.mxu0 0
    %685 = vmatpush1.bf16.msra.mxu0 %v668
    %686 = vmatprep.subr.bf16.mxu0 0
    %687 = vmatpush1.bf16.msra.mxu0 %v669
    %688 = vmatprep.subr.bf16.mxu0 0
    %689 = vmatpush1.bf16.msra.mxu0 %v670
    %690 = vmatprep.subr.bf16.mxu0 0
    %691 = vmatpush1.bf16.msra.mxu0 %v671
    %692 = vmatprep.subr.bf16.mxu0 0
    %693 = vmatpush1.bf16.msra.mxu0 %v672
    %694 = vmatprep.subr.bf16.mxu0 0
    %695 = vmatpush1.bf16.msra.mxu0 %v673
    %696 = vmatprep.subr.bf16.mxu0 0
    %697 = vmatpush1.bf16.msra.mxu0 %v674
    %698 = vmatprep.subr.bf16.mxu0 0
    %699 = vmatpush1.bf16.msra.mxu0 %v675
    %700 = vmatprep.subr.bf16.mxu0 0
    %701 = vmatpush1.bf16.msra.mxu0 0
    %702 = vmatprep.subr.bf16.mxu0 0
    %703 = vmatpush1.bf16.msra.mxu0 0
    %704 = vmatprep.subr.bf16.mxu0 0
    %705 = vmatpush1.bf16.msra.mxu0 0
    %706 = vmatprep.subr.bf16.mxu0 0
    %707 = vmatpush1.bf16.msra.mxu0 0
    %708 = vmatprep.subr.bf16.mxu0 0
    %709 = vmatpush1.bf16.msra.mxu0 0
    %710 = vmatprep.subr.bf16.mxu0 0
    %711 = vmatpush1.bf16.msra.mxu0 0
    %712 = vmatprep.subr.bf16.mxu0 0
    %713 = vmatpush1.bf16.msra.mxu0 0
    %714 = vmatprep.subr.bf16.mxu0 0
    %715 = vmatpush1.bf16.msra.mxu0 0
    %716 = vmatprep.mubr.bf16.mxu0 0
    %717 = vmatmul.mubr.bf16.gmra.mrb[0].mxu0 %v610
    %v718 = vpop.f32.mrb[0].mxu0
    %v719 = vadd.f32 %v634, %v718
    %v720 = vpop.f32.mrb[0].mxu0
    %v721 = vpop.f32.mrb[0].mxu0
    %v722 = vpop.f32.mrb[0].mxu0
    %723 = vdwg.mxu0
    %s724 = scalar_lea.vmem [#allocation3], 320
    %v725 = vld [vmem:[%s724] sm:$0xf]
    %v726 = vld [vmem:[%s724 + $0x4] sm:$0xf]
    %v727 = vld [vmem:[%s724 + $0x8] sm:$0xf]
    %v728 = vld [vmem:[%s724 + $0xc] sm:$0xf]
    %v729 = vld [vmem:[%s724 + $0x10] sm:$0xf]
    %v730 = vld [vmem:[%s724 + $0x14] sm:$0xf]
    %v731 = vld [vmem:[%s724 + $0x18] sm:$0xf]
    %v732 = vld [vmem:[%s724 + $0x1c] sm:$0xf]
    %v733 = vld [vmem:[%s724 + $0x20] sm:$0xf]
    %v734 = vld [vmem:[%s724 + $0x24] sm:$0xf]
    %v735 = vld [vmem:[%s724 + $0x28] sm:$0xf]
    %v736 = vld [vmem:[%s724 + $0x2c] sm:$0xf]
    %v737 = vld [vmem:[%s724 + $0x30] sm:$0xf]
    %v738 = vld [vmem:[%s724 + $0x34] sm:$0xf]
    %v739 = vld [vmem:[%s724 + $0x38] sm:$0xf]
    %v740 = vld [vmem:[%s724 + $0x3c] sm:$0xf]
    %s741 = scalar_lea.vmem %s2, 5
    %v742 = vld [vmem:[%s741] sm:$0x1]
    %v744 = vlaneseq
    %v745 = vshrl.u32 %v744, 7
    %v746 = vsub.s32 0, %v745
    %v747 = vrot.slane %v742, %v746
    %v765 = vunpack.c.l.b16 %v725
    %v766 = vunpack.c.l.b16 %v726
    %v767 = vunpack.c.l.b16 %v727
    %v768 = vunpack.c.l.b16 %v728
    %v769 = vunpack.c.l.b16 %v729
    %v770 = vunpack.c.l.b16 %v730
    %v771 = vunpack.c.l.b16 %v731
    %v772 = vunpack.c.l.b16 %v732
    %v773 = vunpack.c.l.b16 %v733
    %v774 = vunpack.c.l.b16 %v734
    %v775 = vunpack.c.l.b16 %v735
    %v776 = vunpack.c.l.b16 %v736
    %v777 = vunpack.c.l.b16 %v737
    %v778 = vunpack.c.l.b16 %v738
    %v779 = vunpack.c.l.b16 %v739
    %v780 = vunpack.c.l.b16 %v740
    %v781 = vpack.c.b16 %v766, %v765
    %v782 = vpack.c.b16 %v768, %v767
    %v783 = vpack.c.b16 %v770, %v769
    %v784 = vpack.c.b16 %v772, %v771
    %v785 = vpack.c.b16 %v774, %v773
    %v786 = vpack.c.b16 %v776, %v775
    %v787 = vpack.c.b16 %v778, %v777
    %v788 = vpack.c.b16 %v780, %v779
    %797 = vmatprep.subr.bf16.mxu0 0
    %798 = vmatpush1.bf16.msra.mxu0 %v781
    %799 = vmatprep.subr.bf16.mxu0 0
    %800 = vmatpush1.bf16.msra.mxu0 %v782
    %801 = vmatprep.subr.bf16.mxu0 0
    %802 = vmatpush1.bf16.msra.mxu0 %v783
    %803 = vmatprep.subr.bf16.mxu0 0
    %804 = vmatpush1.bf16.msra.mxu0 %v784
    %805 = vmatprep.subr.bf16.mxu0 0
    %806 = vmatpush1.bf16.msra.mxu0 %v785
    %807 = vmatprep.subr.bf16.mxu0 0
    %808 = vmatpush1.bf16.msra.mxu0 %v786
    %809 = vmatprep.subr.bf16.mxu0 0
    %810 = vmatpush1.bf16.msra.mxu0 %v787
    %811 = vmatprep.subr.bf16.mxu0 0
    %812 = vmatpush1.bf16.msra.mxu0 %v788
    %813 = vmatprep.subr.bf16.mxu0 0
    %814 = vmatpush1.bf16.msra.mxu0 0
    %815 = vmatprep.subr.bf16.mxu0 0
    %816 = vmatpush1.bf16.msra.mxu0 0
    %817 = vmatprep.subr.bf16.mxu0 0
    %818 = vmatpush1.bf16.msra.mxu0 0
    %819 = vmatprep.subr.bf16.mxu0 0
    %820 = vmatpush1.bf16.msra.mxu0 0
    %821 = vmatprep.subr.bf16.mxu0 0
    %822 = vmatpush1.bf16.msra.mxu0 0
    %823 = vmatprep.subr.bf16.mxu0 0
    %824 = vmatpush1.bf16.msra.mxu0 0
    %825 = vmatprep.subr.bf16.mxu0 0
    %826 = vmatpush1.bf16.msra.mxu0 0
    %827 = vmatprep.subr.bf16.mxu0 0
    %828 = vmatpush1.bf16.msra.mxu0 0
    %829 = vmatprep.mubr.bf16.mxu0 0
    %830 = vmatmul.mubr.bf16.gmra.mrb[0].mxu0 %v610
    %v831 = vpop.f32.mrb[0].mxu0
    %v832 = vadd.f32 %v747, %v831
    %v833 = vpop.f32.mrb[0].mxu0
    %v834 = vpop.f32.mrb[0].mxu0
    %v835 = vpop.f32.mrb[0].mxu0
    %836 = vdwg.mxu0
    %v837 = vmax.f32 %v832, 0.0
    %v838 = vpack.c.bf16 %v837, %v837
    %s839 = scalar_lea.vmem [#allocation3], 384
    %v840 = vld [vmem:[%s839] sm:$0xf]
    %v841 = vld [vmem:[%s839 + $0x4] sm:$0xf]
    %v842 = vld [vmem:[%s839 + $0x8] sm:$0xf]
    %v843 = vld [vmem:[%s839 + $0xc] sm:$0xf]
    %v844 = vld [vmem:[%s839 + $0x10] sm:$0xf]
    %v845 = vld [vmem:[%s839 + $0x14] sm:$0xf]
    %v846 = vld [vmem:[%s839 + $0x18] sm:$0xf]
    %v847 = vld [vmem:[%s839 + $0x1c] sm:$0xf]
    %v848 = vld [vmem:[%s839 + $0x20] sm:$0xf]
    %v849 = vld [vmem:[%s839 + $0x24] sm:$0xf]
    %v850 = vld [vmem:[%s839 + $0x28] sm:$0xf]
    %v851 = vld [vmem:[%s839 + $0x2c] sm:$0xf]
    %v852 = vld [vmem:[%s839 + $0x30] sm:$0xf]
    %v853 = vld [vmem:[%s839 + $0x34] sm:$0xf]
    %v854 = vld [vmem:[%s839 + $0x38] sm:$0xf]
    %v855 = vld [vmem:[%s839 + $0x3c] sm:$0xf]
    %s856 = scalar_lea.vmem %s2, 6
    %v857 = vld [vmem:[%s856] sm:$0x1]
    %v859 = vlaneseq
    %v860 = vshrl.u32 %v859, 7
    %v861 = vsub.s32 0, %v860
    %v862 = vrot.slane %v857, %v861
    %v880 = vunpack.c.l.b16 %v840
    %v881 = vunpack.c.l.b16 %v841
    %v882 = vunpack.c.l.b16 %v842
    %v883 = vunpack.c.l.b16 %v843
    %v884 = vunpack.c.l.b16 %v844
    %v885 = vunpack.c.l.b16 %v845
    %v886 = vunpack.c.l.b16 %v846
    %v887 = vunpack.c.l.b16 %v847
    %v888 = vunpack.c.l.b16 %v848
    %v889 = vunpack.c.l.b16 %v849
    %v890 = vunpack.c.l.b16 %v850
    %v891 = vunpack.c.l.b16 %v851
    %v892 = vunpack.c.l.b16 %v852
    %v893 = vunpack.c.l.b16 %v853
    %v894 = vunpack.c.l.b16 %v854
    %v895 = vunpack.c.l.b16 %v855
    %v896 = vpack.c.b16 %v881, %v880
    %v897 = vpack.c.b16 %v883, %v882
    %v898 = vpack.c.b16 %v885, %v884
    %v899 = vpack.c.b16 %v887, %v886
    %v900 = vpack.c.b16 %v889, %v888
    %v901 = vpack.c.b16 %v891, %v890
    %v902 = vpack.c.b16 %v893, %v892
    %v903 = vpack.c.b16 %v895, %v894
    %912 = vmatprep.subr.bf16.mxu0 0
    %913 = vmatpush1.bf16.msra.mxu0 %v896
    %914 = vmatprep.subr.bf16.mxu0 0
    %915 = vmatpush1.bf16.msra.mxu0 %v897
    %916 = vmatprep.subr.bf16.mxu0 0
    %917 = vmatpush1.bf16.msra.mxu0 %v898
    %918 = vmatprep.subr.bf16.mxu0 0
    %919 = vmatpush1.bf16.msra.mxu0 %v899
    %920 = vmatprep.subr.bf16.mxu0 0
    %921 = vmatpush1.bf16.msra.mxu0 %v900
    %922 = vmatprep.subr.bf16.mxu0 0
    %923 = vmatpush1.bf16.msra.mxu0 %v901
    %924 = vmatprep.subr.bf16.mxu0 0
    %925 = vmatpush1.bf16.msra.mxu0 %v902
    %926 = vmatprep.subr.bf16.mxu0 0
    %927 = vmatpush1.bf16.msra.mxu0 %v903
    %928 = vmatprep.subr.bf16.mxu0 0
    %929 = vmatpush1.bf16.msra.mxu0 0
    %930 = vmatprep.subr.bf16.mxu0 0
    %931 = vmatpush1.bf16.msra.mxu0 0
    %932 = vmatprep.subr.bf16.mxu0 0
    %933 = vmatpush1.bf16.msra.mxu0 0
    %934 = vmatprep.subr.bf16.mxu0 0
    %935 = vmatpush1.bf16.msra.mxu0 0
    %936 = vmatprep.subr.bf16.mxu0 0
    %937 = vmatpush1.bf16.msra.mxu0 0
    %938 = vmatprep.subr.bf16.mxu0 0
    %939 = vmatpush1.bf16.msra.mxu0 0
    %940 = vmatprep.subr.bf16.mxu0 0
    %941 = vmatpush1.bf16.msra.mxu0 0
    %942 = vmatprep.subr.bf16.mxu0 0
    %943 = vmatpush1.bf16.msra.mxu0 0
    %944 = vmatprep.mubr.bf16.mxu0 0
    %945 = vmatmul.mubr.bf16.gmra.mrb[0].mxu0 %v838
    %v946 = vpop.f32.mrb[0].mxu0
    %v947 = vadd.f32 %v862, %v946
    %v948 = vpop.f32.mrb[0].mxu0
    %v949 = vpop.f32.mrb[0].mxu0
    %v950 = vpop.f32.mrb[0].mxu0
    %951 = vdwg.mxu0
    %v952 = vadd.f32 %v947, %v719
    %v953 = vmax.f32 %v952, 0.0
    %v954 = vpack.c.bf16 %v953, %v953
    %s955 = scalar_lea.vmem [#allocation3], 512
    %v956 = vld [vmem:[%s955] sm:$0xf]
    %v957 = vld [vmem:[%s955 + $0x4] sm:$0xf]
    %v958 = vld [vmem:[%s955 + $0x8] sm:$0xf]
    %v959 = vld [vmem:[%s955 + $0xc] sm:$0xf]
    %v960 = vld [vmem:[%s955 + $0x10] sm:$0xf]
    %v961 = vld [vmem:[%s955 + $0x14] sm:$0xf]
    %v962 = vld [vmem:[%s955 + $0x18] sm:$0xf]
    %v963 = vld [vmem:[%s955 + $0x1c] sm:$0xf]
    %v964 = vld [vmem:[%s955 + $0x20] sm:$0xf]
    %v965 = vld [vmem:[%s955 + $0x24] sm:$0xf]
    %v966 = vld [vmem:[%s955 + $0x28] sm:$0xf]
    %v967 = vld [vmem:[%s955 + $0x2c] sm:$0xf]
    %v968 = vld [vmem:[%s955 + $0x30] sm:$0xf]
    %v969 = vld [vmem:[%s955 + $0x34] sm:$0xf]
    %v970 = vld [vmem:[%s955 + $0x38] sm:$0xf]
    %v971 = vld [vmem:[%s955 + $0x3c] sm:$0xf]
    %s972 = scalar_lea.vmem %s2, 8
    %v973 = vld [vmem:[%s972] sm:$0x1]
    %v975 = vlaneseq
    %v976 = vshrl.u32 %v975, 7
    %v977 = vsub.s32 0, %v976
    %v978 = vrot.slane %v973, %v977
    %v996 = vunpack.c.l.b16 %v956
    %v997 = vunpack.c.l.b16 %v957
    %v998 = vunpack.c.l.b16 %v958
    %v999 = vunpack.c.l.b16 %v959
    %v1000 = vunpack.c.l.b16 %v960
    %v1001 = vunpack.c.l.b16 %v961
    %v1002 = vunpack.c.l.b16 %v962
    %v1003 = vunpack.c.l.b16 %v963
    %v1004 = vunpack.c.l.b16 %v964
    %v1005 = vunpack.c.l.b16 %v965
    %v1006 = vunpack.c.l.b16 %v966
    %v1007 = vunpack.c.l.b16 %v967
    %v1008 = vunpack.c.l.b16 %v968
    %v1009 = vunpack.c.l.b16 %v969
    %v1010 = vunpack.c.l.b16 %v970
    %v1011 = vunpack.c.l.b16 %v971
    %v1012 = vpack.c.b16 %v997, %v996
    %v1013 = vpack.c.b16 %v999, %v998
    %v1014 = vpack.c.b16 %v1001, %v1000
    %v1015 = vpack.c.b16 %v1003, %v1002
    %v1016 = vpack.c.b16 %v1005, %v1004
    %v1017 = vpack.c.b16 %v1007, %v1006
    %v1018 = vpack.c.b16 %v1009, %v1008
    %v1019 = vpack.c.b16 %v1011, %v1010
    %1028 = vmatprep.subr.bf16.mxu0 0
    %1029 = vmatpush1.bf16.msra.mxu0 %v1012
    %1030 = vmatprep.subr.bf16.mxu0 0
    %1031 = vmatpush1.bf16.msra.mxu0 %v1013
    %1032 = vmatprep.subr.bf16.mxu0 0
    %1033 = vmatpush1.bf16.msra.mxu0 %v1014
    %1034 = vmatprep.subr.bf16.mxu0 0
    %1035 = vmatpush1.bf16.msra.mxu0 %v1015
    %1036 = vmatprep.subr.bf16.mxu0 0
    %1037 = vmatpush1.bf16.msra.mxu0 %v1016
    %1038 = vmatprep.subr.bf16.mxu0 0
    %1039 = vmatpush1.bf16.msra.mxu0 %v1017
    %1040 = vmatprep.subr.bf16.mxu0 0
    %1041 = vmatpush1.bf16.msra.mxu0 %v1018
    %1042 = vmatprep.subr.bf16.mxu0 0
    %1043 = vmatpush1.bf16.msra.mxu0 %v1019
    %1044 = vmatprep.subr.bf16.mxu0 0
    %1045 = vmatpush1.bf16.msra.mxu0 0
    %1046 = vmatprep.subr.bf16.mxu0 0
    %1047 = vmatpush1.bf16.msra.mxu0 0
    %1048 = vmatprep.subr.bf16.mxu0 0
    %1049 = vmatpush1.bf16.msra.mxu0 0
    %1050 = vmatprep.subr.bf16.mxu0 0
    %1051 = vmatpush1.bf16.msra.mxu0 0
    %1052 = vmatprep.subr.bf16.mxu0 0
    %1053 = vmatpush1.bf16.msra.mxu0 0
    %1054 = vmatprep.subr.bf16.mxu0 0
    %1055 = vmatpush1.bf16.msra.mxu0 0
    %1056 = vmatprep.subr.bf16.mxu0 0
    %1057 = vmatpush1.bf16.msra.mxu0 0
    %1058 = vmatprep.subr.bf16.mxu0 0
    %1059 = vmatpush1.bf16.msra.mxu0 0
    %1060 = vmatprep.mubr.bf16.mxu0 0
    %1061 = vmatmul.mubr.bf16.gmra.mrb[0].mxu0 %v954
    %v1062 = vpop.f32.mrb[0].mxu0
    %v1063 = vadd.f32 %v978, %v1062
    %v1064 = vpop.f32.mrb[0].mxu0
    %v1065 = vpop.f32.mrb[0].mxu0
    %v1066 = vpop.f32.mrb[0].mxu0
    %1067 = vdwg.mxu0
    %v1068 = vmax.f32 %v1063, 0.0
    %v1069 = vpack.c.bf16 %v1068, %v1068
    %s1070 = scalar_lea.vmem [#allocation3], 576
    %v1071 = vld [vmem:[%s1070] sm:$0xf]
    %v1072 = vld [vmem:[%s1070 + $0x4] sm:$0xf]
    %v1073 = vld [vmem:[%s1070 + $0x8] sm:$0xf]
    %v1074 = vld [vmem:[%s1070 + $0xc] sm:$0xf]
    %v1075 = vld [vmem:[%s1070 + $0x10] sm:$0xf]
    %v1076 = vld [vmem:[%s1070 + $0x14] sm:$0xf]
    %v1077 = vld [vmem:[%s1070 + $0x18] sm:$0xf]
    %v1078 = vld [vmem:[%s1070 + $0x1c] sm:$0xf]
    %v1079 = vld [vmem:[%s1070 + $0x20] sm:$0xf]
    %v1080 = vld [vmem:[%s1070 + $0x24] sm:$0xf]
    %v1081 = vld [vmem:[%s1070 + $0x28] sm:$0xf]
    %v1082 = vld [vmem:[%s1070 + $0x2c] sm:$0xf]
    %v1083 = vld [vmem:[%s1070 + $0x30] sm:$0xf]
    %v1084 = vld [vmem:[%s1070 + $0x34] sm:$0xf]
    %v1085 = vld [vmem:[%s1070 + $0x38] sm:$0xf]
    %v1086 = vld [vmem:[%s1070 + $0x3c] sm:$0xf]
    %s1087 = scalar_lea.vmem %s2, 9
    %v1088 = vld [vmem:[%s1087] sm:$0x1]
    %v1090 = vlaneseq
    %v1091 = vshrl.u32 %v1090, 7
    %v1092 = vsub.s32 0, %v1091
    %v1093 = vrot.slane %v1088, %v1092
    %v1111 = vunpack.c.l.b16 %v1071
    %v1112 = vunpack.c.l.b16 %v1072
    %v1113 = vunpack.c.l.b16 %v1073
    %v1114 = vunpack.c.l.b16 %v1074
    %v1115 = vunpack.c.l.b16 %v1075
    %v1116 = vunpack.c.l.b16 %v1076
    %v1117 = vunpack.c.l.b16 %v1077
    %v1118 = vunpack.c.l.b16 %v1078
    %v1119 = vunpack.c.l.b16 %v1079
    %v1120 = vunpack.c.l.b16 %v1080
    %v1121 = vunpack.c.l.b16 %v1081
    %v1122 = vunpack.c.l.b16 %v1082
    %v1123 = vunpack.c.l.b16 %v1083
    %v1124 = vunpack.c.l.b16 %v1084
    %v1125 = vunpack.c.l.b16 %v1085
    %v1126 = vunpack.c.l.b16 %v1086
    %v1127 = vpack.c.b16 %v1112, %v1111
    %v1128 = vpack.c.b16 %v1114, %v1113
    %v1129 = vpack.c.b16 %v1116, %v1115
    %v1130 = vpack.c.b16 %v1118, %v1117
    %v1131 = vpack.c.b16 %v1120, %v1119
    %v1132 = vpack.c.b16 %v1122, %v1121
    %v1133 = vpack.c.b16 %v1124, %v1123
    %v1134 = vpack.c.b16 %v1126, %v1125
    %1143 = vmatprep.subr.bf16.mxu0 0
    %1144 = vmatpush1.bf16.msra.mxu0 %v1127
    %1145 = vmatprep.subr.bf16.mxu0 0
    %1146 = vmatpush1.bf16.msra.mxu0 %v1128
    %1147 = vmatprep.subr.bf16.mxu0 0
    %1148 = vmatpush1.bf16.msra.mxu0 %v1129
    %1149 = vmatprep.subr.bf16.mxu0 0
    %1150 = vmatpush1.bf16.msra.mxu0 %v1130
    %1151 = vmatprep.subr.bf16.mxu0 0
    %1152 = vmatpush1.bf16.msra.mxu0 %v1131
    %1153 = vmatprep.subr.bf16.mxu0 0
    %1154 = vmatpush1.bf16.msra.mxu0 %v1132
    %1155 = vmatprep.subr.bf16.mxu0 0
    %1156 = vmatpush1.bf16.msra.mxu0 %v1133
    %1157 = vmatprep.subr.bf16.mxu0 0
    %1158 = vmatpush1.bf16.msra.mxu0 %v1134
    %1159 = vmatprep.subr.bf16.mxu0 0
    %1160 = vmatpush1.bf16.msra.mxu0 0
    %1161 = vmatprep.subr.bf16.mxu0 0
    %1162 = vmatpush1.bf16.msra.mxu0 0
    %1163 = vmatprep.subr.bf16.mxu0 0
    %1164 = vmatpush1.bf16.msra.mxu0 0
    %1165 = vmatprep.subr.bf16.mxu0 0
    %1166 = vmatpush1.bf16.msra.mxu0 0
    %1167 = vmatprep.subr.bf16.mxu0 0
    %1168 = vmatpush1.bf16.msra.mxu0 0
    %1169 = vmatprep.subr.bf16.mxu0 0
    %1170 = vmatpush1.bf16.msra.mxu0 0
    %1171 = vmatprep.subr.bf16.mxu0 0
    %1172 = vmatpush1.bf16.msra.mxu0 0
    %1173 = vmatprep.subr.bf16.mxu0 0
    %1174 = vmatpush1.bf16.msra.mxu0 0
    %1175 = vmatprep.mubr.bf16.mxu0 0
    %1176 = vmatmul.mubr.bf16.gmra.mrb[0].mxu0 %v1069
    %v1177 = vpop.f32.mrb[0].mxu0
    %v1178 = vadd.f32 %v1093, %v1177
    %v1179 = vpop.f32.mrb[0].mxu0
    %v1180 = vpop.f32.mrb[0].mxu0
    %v1181 = vpop.f32.mrb[0].mxu0
    %1182 = vdwg.mxu0
    %v1183 = vadd.f32 %v1178, %v953
    %v1184 = vmax.f32 %v1183, 0.0
    %v1185 = vpack.c.bf16 %v1184, %v1184
    %s1186 = scalar_lea.vmem [#allocation3], 768
    %v1187 = vld [vmem:[%s1186] sm:$0xf]
    %v1188 = vld [vmem:[%s1186 + $0x4] sm:$0xf]
    %v1189 = vld [vmem:[%s1186 + $0x8] sm:$0xf]
    %v1190 = vld [vmem:[%s1186 + $0xc] sm:$0xf]
    %v1191 = vld [vmem:[%s1186 + $0x10] sm:$0xf]
    %v1192 = vld [vmem:[%s1186 + $0x14] sm:$0xf]
    %v1193 = vld [vmem:[%s1186 + $0x18] sm:$0xf]
    %v1194 = vld [vmem:[%s1186 + $0x1c] sm:$0xf]
    %v1195 = vld [vmem:[%s1186 + $0x20] sm:$0xf]
    %v1196 = vld [vmem:[%s1186 + $0x24] sm:$0xf]
    %v1197 = vld [vmem:[%s1186 + $0x28] sm:$0xf]
    %v1198 = vld [vmem:[%s1186 + $0x2c] sm:$0xf]
    %v1199 = vld [vmem:[%s1186 + $0x30] sm:$0xf]
    %v1200 = vld [vmem:[%s1186 + $0x34] sm:$0xf]
    %v1201 = vld [vmem:[%s1186 + $0x38] sm:$0xf]
    %v1202 = vld [vmem:[%s1186 + $0x3c] sm:$0xf]
    %s1203 = scalar_lea.vmem %s2, 12
    %v1204 = vld [vmem:[%s1203] sm:$0x1]
    %v1206 = vlaneseq
    %v1207 = vshrl.u32 %v1206, 7
    %v1208 = vsub.s32 0, %v1207
    %v1209 = vrot.slane %v1204, %v1208
    %v1227 = vunpack.c.l.b16 %v1187
    %v1228 = vunpack.c.l.b16 %v1188
    %v1229 = vunpack.c.l.b16 %v1189
    %v1230 = vunpack.c.l.b16 %v1190
    %v1231 = vunpack.c.l.b16 %v1191
    %v1232 = vunpack.c.l.b16 %v1192
    %v1233 = vunpack.c.l.b16 %v1193
    %v1234 = vunpack.c.l.b16 %v1194
    %v1235 = vunpack.c.l.b16 %v1195
    %v1236 = vunpack.c.l.b16 %v1196
    %v1237 = vunpack.c.l.b16 %v1197
    %v1238 = vunpack.c.l.b16 %v1198
    %v1239 = vunpack.c.l.b16 %v1199
    %v1240 = vunpack.c.l.b16 %v1200
    %v1241 = vunpack.c.l.b16 %v1201
    %v1242 = vunpack.c.l.b16 %v1202
    %v1243 = vpack.c.b16 %v1228, %v1227
    %v1244 = vpack.c.b16 %v1230, %v1229
    %v1245 = vpack.c.b16 %v1232, %v1231
    %v1246 = vpack.c.b16 %v1234, %v1233
    %v1247 = vpack.c.b16 %v1236, %v1235
    %v1248 = vpack.c.b16 %v1238, %v1237
    %v1249 = vpack.c.b16 %v1240, %v1239
    %v1250 = vpack.c.b16 %v1242, %v1241
    %1259 = vmatprep.subr.bf16.mxu0 0
    %1260 = vmatpush1.bf16.msra.mxu0 %v1243
    %1261 = vmatprep.subr.bf16.mxu0 0
    %1262 = vmatpush1.bf16.msra.mxu0 %v1244
    %1263 = vmatprep.subr.bf16.mxu0 0
    %1264 = vmatpush1.bf16.msra.mxu0 %v1245
    %1265 = vmatprep.subr.bf16.mxu0 0
    %1266 = vmatpush1.bf16.msra.mxu0 %v1246
    %1267 = vmatprep.subr.bf16.mxu0 0
    %1268 = vmatpush1.bf16.msra.mxu0 %v1247
    %1269 = vmatprep.subr.bf16.mxu0 0
    %1270 = vmatpush1.bf16.msra.mxu0 %v1248
    %1271 = vmatprep.subr.bf16.mxu0 0
    %1272 = vmatpush1.bf16.msra.mxu0 %v1249
    %1273 = vmatprep.subr.bf16.mxu0 0
    %1274 = vmatpush1.bf16.msra.mxu0 %v1250
    %1275 = vmatprep.subr.bf16.mxu0 0
    %1276 = vmatpush1.bf16.msra.mxu0 0
    %1277 = vmatprep.subr.bf16.mxu0 0
    %1278 = vmatpush1.bf16.msra.mxu0 0
    %1279 = vmatprep.subr.bf16.mxu0 0
    %1280 = vmatpush1.bf16.msra.mxu0 0
    %1281 = vmatprep.subr.bf16.mxu0 0
    %1282 = vmatpush1.bf16.msra.mxu0 0
    %1283 = vmatprep.subr.bf16.mxu0 0
    %1284 = vmatpush1.bf16.msra.mxu0 0
    %1285 = vmatprep.subr.bf16.mxu0 0
    %1286 = vmatpush1.bf16.msra.mxu0 0
    %1287 = vmatprep.subr.bf16.mxu0 0
    %1288 = vmatpush1.bf16.msra.mxu0 0
    %1289 = vmatprep.subr.bf16.mxu0 0
    %1290 = vmatpush1.bf16.msra.mxu0 0
    %1291 = vmatprep.mubr.bf16.mxu0 0
    %1292 = vmatmul.mubr.bf16.gmra.mrb[0].mxu0 %v1185
    %v1293 = vpop.f32.mrb[0].mxu0
    %v1294 = vadd.f32 %v1209, %v1293
    %v1295 = vpop.f32.mrb[0].mxu0
    %v1296 = vpop.f32.mrb[0].mxu0
    %v1297 = vpop.f32.mrb[0].mxu0
    %1298 = vdwg.mxu0
    %s1299 = scalar_lea.vmem [#allocation3], 640
    %v1300 = vld [vmem:[%s1299] sm:$0xf]
    %v1301 = vld [vmem:[%s1299 + $0x4] sm:$0xf]
    %v1302 = vld [vmem:[%s1299 + $0x8] sm:$0xf]
    %v1303 = vld [vmem:[%s1299 + $0xc] sm:$0xf]
    %v1304 = vld [vmem:[%s1299 + $0x10] sm:$0xf]
    %v1305 = vld [vmem:[%s1299 + $0x14] sm:$0xf]
    %v1306 = vld [vmem:[%s1299 + $0x18] sm:$0xf]
    %v1307 = vld [vmem:[%s1299 + $0x1c] sm:$0xf]
    %v1308 = vld [vmem:[%s1299 + $0x20] sm:$0xf]
    %v1309 = vld [vmem:[%s1299 + $0x24] sm:$0xf]
    %v1310 = vld [vmem:[%s1299 + $0x28] sm:$0xf]
    %v1311 = vld [vmem:[%s1299 + $0x2c] sm:$0xf]
    %v1312 = vld [vmem:[%s1299 + $0x30] sm:$0xf]
    %v1313 = vld [vmem:[%s1299 + $0x34] sm:$0xf]
    %v1314 = vld [vmem:[%s1299 + $0x38] sm:$0xf]
    %v1315 = vld [vmem:[%s1299 + $0x3c] sm:$0xf]
    %s1316 = scalar_lea.vmem %s2, 10
    %v1317 = vld [vmem:[%s1316] sm:$0x1]
    %v1319 = vlaneseq
    %v1320 = vshrl.u32 %v1319, 7
    %v1321 = vsub.s32 0, %v1320
    %v1322 = vrot.slane %v1317, %v1321
    %v1340 = vunpack.c.l.b16 %v1300
    %v1341 = vunpack.c.l.b16 %v1301
    %v1342 = vunpack.c.l.b16 %v1302
    %v1343 = vunpack.c.l.b16 %v1303
    %v1344 = vunpack.c.l.b16 %v1304
    %v1345 = vunpack.c.l.b16 %v1305
    %v1346 = vunpack.c.l.b16 %v1306
    %v1347 = vunpack.c.l.b16 %v1307
    %v1348 = vunpack.c.l.b16 %v1308
    %v1349 = vunpack.c.l.b16 %v1309
    %v1350 = vunpack.c.l.b16 %v1310
    %v1351 = vunpack.c.l.b16 %v1311
    %v1352 = vunpack.c.l.b16 %v1312
    %v1353 = vunpack.c.l.b16 %v1313
    %v1354 = vunpack.c.l.b16 %v1314
    %v1355 = vunpack.c.l.b16 %v1315
    %v1356 = vpack.c.b16 %v1341, %v1340
    %v1357 = vpack.c.b16 %v1343, %v1342
    %v1358 = vpack.c.b16 %v1345, %v1344
    %v1359 = vpack.c.b16 %v1347, %v1346
    %v1360 = vpack.c.b16 %v1349, %v1348
    %v1361 = vpack.c.b16 %v1351, %v1350
    %v1362 = vpack.c.b16 %v1353, %v1352
    %v1363 = vpack.c.b16 %v1355, %v1354
    %1372 = vmatprep.subr.bf16.mxu0 0
    %1373 = vmatpush1.bf16.msra.mxu0 %v1356
    %1374 = vmatprep.subr.bf16.mxu0 0
    %1375 = vmatpush1.bf16.msra.mxu0 %v1357
    %1376 = vmatprep.subr.bf16.mxu0 0
    %1377 = vmatpush1.bf16.msra.mxu0 %v1358
    %1378 = vmatprep.subr.bf16.mxu0 0
    %1379 = vmatpush1.bf16.msra.mxu0 %v1359
    %1380 = vmatprep.subr.bf16.mxu0 0
    %1381 = vmatpush1.bf16.msra.mxu0 %v1360
    %1382 = vmatprep.subr.bf16.mxu0 0
    %1383 = vmatpush1.bf16.msra.mxu0 %v1361
    %1384 = vmatprep.subr.bf16.mxu0 0
    %1385 = vmatpush1.bf16.msra.mxu0 %v1362
    %1386 = vmatprep.subr.bf16.mxu0 0
    %1387 = vmatpush1.bf16.msra.mxu0 %v1363
    %1388 = vmatprep.subr.bf16.mxu0 0
    %1389 = vmatpush1.bf16.msra.mxu0 0
    %1390 = vmatprep.subr.bf16.mxu0 0
    %1391 = vmatpush1.bf16.msra.mxu0 0
    %1392 = vmatprep.subr.bf16.mxu0 0
    %1393 = vmatpush1.bf16.msra.mxu0 0
    %1394 = vmatprep.subr.bf16.mxu0 0
    %1395 = vmatpush1.bf16.msra.mxu0 0
    %1396 = vmatprep.subr.bf16.mxu0 0
    %1397 = vmatpush1.bf16.msra.mxu0 0
    %1398 = vmatprep.subr.bf16.mxu0 0
    %1399 = vmatpush1.bf16.msra.mxu0 0
    %1400 = vmatprep.subr.bf16.mxu0 0
    %1401 = vmatpush1.bf16.msra.mxu0 0
    %1402 = vmatprep.subr.bf16.mxu0 0
    %1403 = vmatpush1.bf16.msra.mxu0 0
    %1404 = vmatprep.mubr.bf16.mxu0 0
    %1405 = vmatmul.mubr.bf16.gmra.mrb[0].mxu0 %v1185
    %v1406 = vpop.f32.mrb[0].mxu0
    %v1407 = vadd.f32 %v1322, %v1406
    %v1408 = vpop.f32.mrb[0].mxu0
    %v1409 = vpop.f32.mrb[0].mxu0
    %v1410 = vpop.f32.mrb[0].mxu0
    %1411 = vdwg.mxu0
    %v1412 = vmax.f32 %v1407, 0.0
    %v1413 = vpack.c.bf16 %v1412, %v1412
    %s1414 = scalar_lea.vmem [#allocation3], 704
    %v1415 = vld [vmem:[%s1414] sm:$0xf]
    %v1416 = vld [vmem:[%s1414 + $0x4] sm:$0xf]
    %v1417 = vld [vmem:[%s1414 + $0x8] sm:$0xf]
    %v1418 = vld [vmem:[%s1414 + $0xc] sm:$0xf]
    %v1419 = vld [vmem:[%s1414 + $0x10] sm:$0xf]
    %v1420 = vld [vmem:[%s1414 + $0x14] sm:$0xf]
    %v1421 = vld [vmem:[%s1414 + $0x18] sm:$0xf]
    %v1422 = vld [vmem:[%s1414 + $0x1c] sm:$0xf]
    %v1423 = vld [vmem:[%s1414 + $0x20] sm:$0xf]
    %v1424 = vld [vmem:[%s1414 + $0x24] sm:$0xf]
    %v1425 = vld [vmem:[%s1414 + $0x28] sm:$0xf]
    %v1426 = vld [vmem:[%s1414 + $0x2c] sm:$0xf]
    %v1427 = vld [vmem:[%s1414 + $0x30] sm:$0xf]
    %v1428 = vld [vmem:[%s1414 + $0x34] sm:$0xf]
    %v1429 = vld [vmem:[%s1414 + $0x38] sm:$0xf]
    %v1430 = vld [vmem:[%s1414 + $0x3c] sm:$0xf]
    %s1431 = scalar_lea.vmem %s2, 11
    %v1432 = vld [vmem:[%s1431] sm:$0x1]
    %v1434 = vlaneseq
    %v1435 = vshrl.u32 %v1434, 7
    %v1436 = vsub.s32 0, %v1435
    %v1437 = vrot.slane %v1432, %v1436
    %v1455 = vunpack.c.l.b16 %v1415
    %v1456 = vunpack.c.l.b16 %v1416
    %v1457 = vunpack.c.l.b16 %v1417
    %v1458 = vunpack.c.l.b16 %v1418
    %v1459 = vunpack.c.l.b16 %v1419
    %v1460 = vunpack.c.l.b16 %v1420
    %v1461 = vunpack.c.l.b16 %v1421
    %v1462 = vunpack.c.l.b16 %v1422
    %v1463 = vunpack.c.l.b16 %v1423
    %v1464 = vunpack.c.l.b16 %v1424
    %v1465 = vunpack.c.l.b16 %v1425
    %v1466 = vunpack.c.l.b16 %v1426
    %v1467 = vunpack.c.l.b16 %v1427
    %v1468 = vunpack.c.l.b16 %v1428
    %v1469 = vunpack.c.l.b16 %v1429
    %v1470 = vunpack.c.l.b16 %v1430
    %v1471 = vpack.c.b16 %v1456, %v1455
    %v1472 = vpack.c.b16 %v1458, %v1457
    %v1473 = vpack.c.b16 %v1460, %v1459
    %v1474 = vpack.c.b16 %v1462, %v1461
    %v1475 = vpack.c.b16 %v1464, %v1463
    %v1476 = vpack.c.b16 %v1466, %v1465
    %v1477 = vpack.c.b16 %v1468, %v1467
    %v1478 = vpack.c.b16 %v1470, %v1469
    %1487 = vmatprep.subr.bf16.mxu0 0
    %1488 = vmatpush1.bf16.msra.mxu0 %v1471
    %1489 = vmatprep.subr.bf16.mxu0 0
    %1490 = vmatpush1.bf16.msra.mxu0 %v1472
    %1491 = vmatprep.subr.bf16.mxu0 0
    %1492 = vmatpush1.bf16.msra.mxu0 %v1473
    %1493 = vmatprep.subr.bf16.mxu0 0
    %1494 = vmatpush1.bf16.msra.mxu0 %v1474
    %1495 = vmatprep.subr.bf16.mxu0 0
    %1496 = vmatpush1.bf16.msra.mxu0 %v1475
    %1497 = vmatprep.subr.bf16.mxu0 0
    %1498 = vmatpush1.bf16.msra.mxu0 %v1476
    %1499 = vmatprep.subr.bf16.mxu0 0
    %1500 = vmatpush1.bf16.msra.mxu0 %v1477
    %1501 = vmatprep.subr.bf16.mxu0 0
    %1502 = vmatpush1.bf16.msra.mxu0 %v1478
    %1503 = vmatprep.subr.bf16.mxu0 0
    %1504 = vmatpush1.bf16.msra.mxu0 0
    %1505 = vmatprep.subr.bf16.mxu0 0
    %1506 = vmatpush1.bf16.msra.mxu0 0
    %1507 = vmatprep.subr.bf16.mxu0 0
    %1508 = vmatpush1.bf16.msra.mxu0 0
    %1509 = vmatprep.subr.bf16.mxu0 0
    %1510 = vmatpush1.bf16.msra.mxu0 0
    %1511 = vmatprep.subr.bf16.mxu0 0
    %1512 = vmatpush1.bf16.msra.mxu0 0
    %1513 = vmatprep.subr.bf16.mxu0 0
    %1514 = vmatpush1.bf16.msra.mxu0 0
    %1515 = vmatprep.subr.bf16.mxu0 0
    %1516 = vmatpush1.bf16.msra.mxu0 0
    %1517 = vmatprep.subr.bf16.mxu0 0
    %1518 = vmatpush1.bf16.msra.mxu0 0
    %1519 = vmatprep.mubr.bf16.mxu0 0
    %1520 = vmatmul.mubr.bf16.gmra.mrb[0].mxu0 %v1413
    %v1521 = vpop.f32.mrb[0].mxu0
    %v1522 = vadd.f32 %v1437, %v1521
    %v1523 = vpop.f32.mrb[0].mxu0
    %v1524 = vpop.f32.mrb[0].mxu0
    %v1525 = vpop.f32.mrb[0].mxu0
    %1526 = vdwg.mxu0
    %v1527 = vadd.f32 %v1522, %v1294
    %v1528 = vmax.f32 %v1527, 0.0
    %v1529 = vpack.c.bf16 %v1528, %v1528
    %s1530 = scalar_lea.vmem [#allocation3], 832
    %v1531 = vld [vmem:[%s1530] sm:$0xf]
    %v1532 = vld [vmem:[%s1530 + $0x4] sm:$0xf]
    %v1533 = vld [vmem:[%s1530 + $0x8] sm:$0xf]
    %v1534 = vld [vmem:[%s1530 + $0xc] sm:$0xf]
    %v1535 = vld [vmem:[%s1530 + $0x10] sm:$0xf]
    %v1536 = vld [vmem:[%s1530 + $0x14] sm:$0xf]
    %v1537 = vld [vmem:[%s1530 + $0x18] sm:$0xf]
    %v1538 = vld [vmem:[%s1530 + $0x1c] sm:$0xf]
    %v1539 = vld [vmem:[%s1530 + $0x20] sm:$0xf]
    %v1540 = vld [vmem:[%s1530 + $0x24] sm:$0xf]
    %v1541 = vld [vmem:[%s1530 + $0x28] sm:$0xf]
    %v1542 = vld [vmem:[%s1530 + $0x2c] sm:$0xf]
    %v1543 = vld [vmem:[%s1530 + $0x30] sm:$0xf]
    %v1544 = vld [vmem:[%s1530 + $0x34] sm:$0xf]
    %v1545 = vld [vmem:[%s1530 + $0x38] sm:$0xf]
    %v1546 = vld [vmem:[%s1530 + $0x3c] sm:$0xf]
    %s1547 = scalar_lea.vmem %s2, 13
    %v1548 = vld [vmem:[%s1547] sm:$0x1]
    %v1550 = vlaneseq
    %v1551 = vshrl.u32 %v1550, 7
    %v1552 = vsub.s32 0, %v1551
    %v1553 = vrot.slane %v1548, %v1552
    %v1571 = vunpack.c.l.b16 %v1531
    %v1572 = vunpack.c.l.b16 %v1532
    %v1573 = vunpack.c.l.b16 %v1533
    %v1574 = vunpack.c.l.b16 %v1534
    %v1575 = vunpack.c.l.b16 %v1535
    %v1576 = vunpack.c.l.b16 %v1536
    %v1577 = vunpack.c.l.b16 %v1537
    %v1578 = vunpack.c.l.b16 %v1538
    %v1579 = vunpack.c.l.b16 %v1539
    %v1580 = vunpack.c.l.b16 %v1540
    %v1581 = vunpack.c.l.b16 %v1541
    %v1582 = vunpack.c.l.b16 %v1542
    %v1583 = vunpack.c.l.b16 %v1543
    %v1584 = vunpack.c.l.b16 %v1544
    %v1585 = vunpack.c.l.b16 %v1545
    %v1586 = vunpack.c.l.b16 %v1546
    %v1587 = vpack.c.b16 %v1572, %v1571
    %v1588 = vpack.c.b16 %v1574, %v1573
    %v1589 = vpack.c.b16 %v1576, %v1575
    %v1590 = vpack.c.b16 %v1578, %v1577
    %v1591 = vpack.c.b16 %v1580, %v1579
    %v1592 = vpack.c.b16 %v1582, %v1581
    %v1593 = vpack.c.b16 %v1584, %v1583
    %v1594 = vpack.c.b16 %v1586, %v1585
    %1603 = vmatprep.subr.bf16.mxu0 0
    %1604 = vmatpush1.bf16.msra.mxu0 %v1587
    %1605 = vmatprep.subr.bf16.mxu0 0
    %1606 = vmatpush1.bf16.msra.mxu0 %v1588
    %1607 = vmatprep.subr.bf16.mxu0 0
    %1608 = vmatpush1.bf16.msra.mxu0 %v1589
    %1609 = vmatprep.subr.bf16.mxu0 0
    %1610 = vmatpush1.bf16.msra.mxu0 %v1590
    %1611 = vmatprep.subr.bf16.mxu0 0
    %1612 = vmatpush1.bf16.msra.mxu0 %v1591
    %1613 = vmatprep.subr.bf16.mxu0 0
    %1614 = vmatpush1.bf16.msra.mxu0 %v1592
    %1615 = vmatprep.subr.bf16.mxu0 0
    %1616 = vmatpush1.bf16.msra.mxu0 %v1593
    %1617 = vmatprep.subr.bf16.mxu0 0
    %1618 = vmatpush1.bf16.msra.mxu0 %v1594
    %1619 = vmatprep.subr.bf16.mxu0 0
    %1620 = vmatpush1.bf16.msra.mxu0 0
    %1621 = vmatprep.subr.bf16.mxu0 0
    %1622 = vmatpush1.bf16.msra.mxu0 0
    %1623 = vmatprep.subr.bf16.mxu0 0
    %1624 = vmatpush1.bf16.msra.mxu0 0
    %1625 = vmatprep.subr.bf16.mxu0 0
    %1626 = vmatpush1.bf16.msra.mxu0 0
    %1627 = vmatprep.subr.bf16.mxu0 0
    %1628 = vmatpush1.bf16.msra.mxu0 0
    %1629 = vmatprep.subr.bf16.mxu0 0
    %1630 = vmatpush1.bf16.msra.mxu0 0
    %1631 = vmatprep.subr.bf16.mxu0 0
    %1632 = vmatpush1.bf16.msra.mxu0 0
    %1633 = vmatprep.subr.bf16.mxu0 0
    %1634 = vmatpush1.bf16.msra.mxu0 0
    %1635 = vmatprep.mubr.bf16.mxu0 0
    %1636 = vmatmul.mubr.bf16.gmra.mrb[0].mxu0 %v1529
    %v1637 = vpop.f32.mrb[0].mxu0
    %v1638 = vadd.f32 %v1553, %v1637
    %v1639 = vpop.f32.mrb[0].mxu0
    %v1640 = vpop.f32.mrb[0].mxu0
    %v1641 = vpop.f32.mrb[0].mxu0
    %1642 = vdwg.mxu0
    %v1643 = vmax.f32 %v1638, 0.0
    %v1644 = vpack.c.bf16 %v1643, %v1643
    %s1645 = scalar_lea.vmem [#allocation3], 896
    %v1646 = vld [vmem:[%s1645] sm:$0xf]
    %v1647 = vld [vmem:[%s1645 + $0x4] sm:$0xf]
    %v1648 = vld [vmem:[%s1645 + $0x8] sm:$0xf]
    %v1649 = vld [vmem:[%s1645 + $0xc] sm:$0xf]
    %v1650 = vld [vmem:[%s1645 + $0x10] sm:$0xf]
    %v1651 = vld [vmem:[%s1645 + $0x14] sm:$0xf]
    %v1652 = vld [vmem:[%s1645 + $0x18] sm:$0xf]
    %v1653 = vld [vmem:[%s1645 + $0x1c] sm:$0xf]
    %v1654 = vld [vmem:[%s1645 + $0x20] sm:$0xf]
    %v1655 = vld [vmem:[%s1645 + $0x24] sm:$0xf]
    %v1656 = vld [vmem:[%s1645 + $0x28] sm:$0xf]
    %v1657 = vld [vmem:[%s1645 + $0x2c] sm:$0xf]
    %v1658 = vld [vmem:[%s1645 + $0x30] sm:$0xf]
    %v1659 = vld [vmem:[%s1645 + $0x34] sm:$0xf]
    %v1660 = vld [vmem:[%s1645 + $0x38] sm:$0xf]
    %v1661 = vld [vmem:[%s1645 + $0x3c] sm:$0xf]
    %s1662 = scalar_lea.vmem %s2, 14
    %v1663 = vld [vmem:[%s1662] sm:$0x1]
    %v1665 = vlaneseq
    %v1666 = vshrl.u32 %v1665, 7
    %v1667 = vsub.s32 0, %v1666
    %v1668 = vrot.slane %v1663, %v1667
    %v1686 = vunpack.c.l.b16 %v1646
    %v1687 = vunpack.c.l.b16 %v1647
    %v1688 = vunpack.c.l.b16 %v1648
    %v1689 = vunpack.c.l.b16 %v1649
    %v1690 = vunpack.c.l.b16 %v1650
    %v1691 = vunpack.c.l.b16 %v1651
    %v1692 = vunpack.c.l.b16 %v1652
    %v1693 = vunpack.c.l.b16 %v1653
    %v1694 = vunpack.c.l.b16 %v1654
    %v1695 = vunpack.c.l.b16 %v1655
    %v1696 = vunpack.c.l.b16 %v1656
    %v1697 = vunpack.c.l.b16 %v1657
    %v1698 = vunpack.c.l.b16 %v1658
    %v1699 = vunpack.c.l.b16 %v1659
    %v1700 = vunpack.c.l.b16 %v1660
    %v1701 = vunpack.c.l.b16 %v1661
    %v1702 = vpack.c.b16 %v1687, %v1686
    %v1703 = vpack.c.b16 %v1689, %v1688
    %v1704 = vpack.c.b16 %v1691, %v1690
    %v1705 = vpack.c.b16 %v1693, %v1692
    %v1706 = vpack.c.b16 %v1695, %v1694
    %v1707 = vpack.c.b16 %v1697, %v1696
    %v1708 = vpack.c.b16 %v1699, %v1698
    %v1709 = vpack.c.b16 %v1701, %v1700
    %1718 = vmatprep.subr.bf16.mxu0 0
    %1719 = vmatpush1.bf16.msra.mxu0 %v1702
    %1720 = vmatprep.subr.bf16.mxu0 0
    %1721 = vmatpush1.bf16.msra.mxu0 %v1703
    %1722 = vmatprep.subr.bf16.mxu0 0
    %1723 = vmatpush1.bf16.msra.mxu0 %v1704
    %1724 = vmatprep.subr.bf16.mxu0 0
    %1725 = vmatpush1.bf16.msra.mxu0 %v1705
    %1726 = vmatprep.subr.bf16.mxu0 0
    %1727 = vmatpush1.bf16.msra.mxu0 %v1706
    %1728 = vmatprep.subr.bf16.mxu0 0
    %1729 = vmatpush1.bf16.msra.mxu0 %v1707
    %1730 = vmatprep.subr.bf16.mxu0 0
    %1731 = vmatpush1.bf16.msra.mxu0 %v1708
    %1732 = vmatprep.subr.bf16.mxu0 0
    %1733 = vmatpush1.bf16.msra.mxu0 %v1709
    %1734 = vmatprep.subr.bf16.mxu0 0
    %1735 = vmatpush1.bf16.msra.mxu0 0
    %1736 = vmatprep.subr.bf16.mxu0 0
    %1737 = vmatpush1.bf16.msra.mxu0 0
    %1738 = vmatprep.subr.bf16.mxu0 0
    %1739 = vmatpush1.bf16.msra.mxu0 0
    %1740 = vmatprep.subr.bf16.mxu0 0
    %1741 = vmatpush1.bf16.msra.mxu0 0
    %1742 = vmatprep.subr.bf16.mxu0 0
    %1743 = vmatpush1.bf16.msra.mxu0 0
    %1744 = vmatprep.subr.bf16.mxu0 0
    %1745 = vmatpush1.bf16.msra.mxu0 0
    %1746 = vmatprep.subr.bf16.mxu0 0
    %1747 = vmatpush1.bf16.msra.mxu0 0
    %1748 = vmatprep.subr.bf16.mxu0 0
    %1749 = vmatpush1.bf16.msra.mxu0 0
    %1750 = vmatprep.mubr.bf16.mxu0 0
    %1751 = vmatmul.mubr.bf16.gmra.mrb[0].mxu0 %v1644
    %v1752 = vpop.f32.mrb[0].mxu0
    %v1753 = vadd.f32 %v1668, %v1752
    %v1754 = vpop.f32.mrb[0].mxu0
    %v1755 = vpop.f32.mrb[0].mxu0
    %v1756 = vpop.f32.mrb[0].mxu0
    %1757 = vdwg.mxu0
    %v1758 = vadd.f32 %v1753, %v1528
    %v1759 = vmax.f32 %v1758, 0.0
    %v1760 = vpack.c.bf16 %v1759, %v1759
    %s1761 = scalar_lea.vmem [#allocation3], 960
    %v1762 = vld [vmem:[%s1761] sm:$0xf]
    %v1763 = vld [vmem:[%s1761 + $0x4] sm:$0xf]
    %v1764 = vld [vmem:[%s1761 + $0x8] sm:$0xf]
    %v1765 = vld [vmem:[%s1761 + $0xc] sm:$0xf]
    %v1766 = vld [vmem:[%s1761 + $0x10] sm:$0xf]
    %v1767 = vld [vmem:[%s1761 + $0x14] sm:$0xf]
    %v1768 = vld [vmem:[%s1761 + $0x18] sm:$0xf]
    %v1769 = vld [vmem:[%s1761 + $0x1c] sm:$0xf]
    %v1770 = vld [vmem:[%s1761 + $0x20] sm:$0xf]
    %v1771 = vld [vmem:[%s1761 + $0x24] sm:$0xf]
    %v1772 = vld [vmem:[%s1761 + $0x28] sm:$0xf]
    %v1773 = vld [vmem:[%s1761 + $0x2c] sm:$0xf]
    %v1774 = vld [vmem:[%s1761 + $0x30] sm:$0xf]
    %v1775 = vld [vmem:[%s1761 + $0x34] sm:$0xf]
    %v1776 = vld [vmem:[%s1761 + $0x38] sm:$0xf]
    %v1777 = vld [vmem:[%s1761 + $0x3c] sm:$0xf]
    %s1778 = scalar_lea.vmem %s2, 15
    %v1779 = vld [vmem:[%s1778] sm:$0x1]
    %v1781 = vlaneseq
    %v1782 = vshrl.u32 %v1781, 7
    %v1783 = vsub.s32 0, %v1782
    %v1784 = vrot.slane %v1779, %v1783
    %v1802 = vunpack.c.l.b16 %v1762
    %v1803 = vunpack.c.l.b16 %v1763
    %v1804 = vunpack.c.l.b16 %v1764
    %v1805 = vunpack.c.l.b16 %v1765
    %v1806 = vunpack.c.l.b16 %v1766
    %v1807 = vunpack.c.l.b16 %v1767
    %v1808 = vunpack.c.l.b16 %v1768
    %v1809 = vunpack.c.l.b16 %v1769
    %v1810 = vunpack.c.l.b16 %v1770
    %v1811 = vunpack.c.l.b16 %v1771
    %v1812 = vunpack.c.l.b16 %v1772
    %v1813 = vunpack.c.l.b16 %v1773
    %v1814 = vunpack.c.l.b16 %v1774
    %v1815 = vunpack.c.l.b16 %v1775
    %v1816 = vunpack.c.l.b16 %v1776
    %v1817 = vunpack.c.l.b16 %v1777
    %v1818 = vpack.c.b16 %v1803, %v1802
    %v1819 = vpack.c.b16 %v1805, %v1804
    %v1820 = vpack.c.b16 %v1807, %v1806
    %v1821 = vpack.c.b16 %v1809, %v1808
    %v1822 = vpack.c.b16 %v1811, %v1810
    %v1823 = vpack.c.b16 %v1813, %v1812
    %v1824 = vpack.c.b16 %v1815, %v1814
    %v1825 = vpack.c.b16 %v1817, %v1816
    %1834 = vmatprep.subr.bf16.mxu0 0
    %1835 = vmatpush1.bf16.msra.mxu0 %v1818
    %1836 = vmatprep.subr.bf16.mxu0 0
    %1837 = vmatpush1.bf16.msra.mxu0 %v1819
    %1838 = vmatprep.subr.bf16.mxu0 0
    %1839 = vmatpush1.bf16.msra.mxu0 %v1820
    %1840 = vmatprep.subr.bf16.mxu0 0
    %1841 = vmatpush1.bf16.msra.mxu0 %v1821
    %1842 = vmatprep.subr.bf16.mxu0 0
    %1843 = vmatpush1.bf16.msra.mxu0 %v1822
    %1844 = vmatprep.subr.bf16.mxu0 0
    %1845 = vmatpush1.bf16.msra.mxu0 %v1823
    %1846 = vmatprep.subr.bf16.mxu0 0
    %1847 = vmatpush1.bf16.msra.mxu0 %v1824
    %1848 = vmatprep.subr.bf16.mxu0 0
    %1849 = vmatpush1.bf16.msra.mxu0 %v1825
    %1850 = vmatprep.subr.bf16.mxu0 0
    %1851 = vmatpush1.bf16.msra.mxu0 0
    %1852 = vmatprep.subr.bf16.mxu0 0
    %1853 = vmatpush1.bf16.msra.mxu0 0
    %1854 = vmatprep.subr.bf16.mxu0 0
    %1855 = vmatpush1.bf16.msra.mxu0 0
    %1856 = vmatprep.subr.bf16.mxu0 0
    %1857 = vmatpush1.bf16.msra.mxu0 0
    %1858 = vmatprep.subr.bf16.mxu0 0
    %1859 = vmatpush1.bf16.msra.mxu0 0
    %1860 = vmatprep.subr.bf16.mxu0 0
    %1861 = vmatpush1.bf16.msra.mxu0 0
    %1862 = vmatprep.subr.bf16.mxu0 0
    %1863 = vmatpush1.bf16.msra.mxu0 0
    %1864 = vmatprep.subr.bf16.mxu0 0
    %1865 = vmatpush1.bf16.msra.mxu0 0
    %1866 = vmatprep.mubr.bf16.mxu0 0
    %1867 = vmatmul.mubr.bf16.gmra.mrb[0].mxu0 %v1760
    %v1868 = vpop.f32.mrb[0].mxu0
    %v1869 = vadd.f32 %v1784, %v1868
    %v1870 = vpop.f32.mrb[0].mxu0
    %v1871 = vpop.f32.mrb[0].mxu0
    %v1872 = vpop.f32.mrb[0].mxu0
    %1873 = vdwg.mxu0
    %1874 = vst [vmem:[#allocation6] sm:$0xff] %v1869
    // Predicated region
    $region18: #{_lambda_.1} parent=1 // pred_check
      _
    $region19: #{_lambda_.1} parent=1 // pred_check_branch
      %1876 = sbr.rel (0) target = $region21
    $region20: #{_lambda_.1} parent=1 // pred_region
      %s1878 = ssub.s32 128, 128
      %1879 = vsyncadd [#allocation5], %s1878
      %s1881 = sshll.u32 [#allocation6], 4
      %s1882 = int_to_ptr.vmem [resolvable:$true] %s1881
      %1884 = dma.vmem_to_hbm [thread:$0]  %s1882, 128, %s3, [#allocation5]
    $region21: #{_lambda_.1} parent=1 // pred_fallthru
      _
    // Predicated region
    $region22: #{_lambda_.1} parent=1 // pred_check
      _
    $region23: #{_lambda_.1} parent=1 // pred_check_branch
      %1886 = sbr.rel (0) target = $region25
    $region24: #{_lambda_.1} parent=1 // pred_region
      %1887 = dma.done [#allocation5], 128
    $region25: #{_lambda_.1} parent=1 // pred_fallthru
      _
    %1888 = vsyncpa [#allocation4], 1
    %1889 = vsyncpa [#allocation5], 1

</llo_original>
